<compile_context>
chip_gen: v6e
topology: v6e:2x2x1
jax: 0.10.0
libtpu: 0.0.40
codegen_flags: <defaults>
</compile_context>

<pallas_src>
import functools
import numpy as np

import jax
import jax.numpy as jnp
from jax.experimental import pallas as pl
from jax.experimental.pallas import tpu as pltpu


def _transform_attention_kernel(
    qkvx_ref,                 # (1, TN*T, 3D)  rows ordered n*T + t (vertex-major)
    wqkv_ref, bqkv_ref,       # (3D, 3D), (1, 3D)  block-diag fused fc21/fc22/fc23
    w24_ref, b24_ref,         # (D, D), (1, D)
    w25_ref, b25_ref,         # (D, D), (1, D)
    out_ref,                  # (1, TN*T, D)  rows ordered n*T + q
    *, K, d, TN, T, P,
):
  D = K * d
  rows = qkvx_ref[0]                                            # (TN*T, 3D)

  # One fused MXU pass + one ReLU pass for all three input projections.
  qkv = jnp.dot(rows, wqkv_ref[...],
                preferred_element_type=jnp.float32) + bqkv_ref[...]
  qkv = jnp.maximum(qkv, 0.0)                                   # (TN*T, 3D)
  qkv = qkv.reshape(TN, T, 3 * D)   # leading-dim regroup only (lanes untouched)

  q = qkv[:, :, 0:D]          # (TN, T, D)  query  (relu(fc21(STE_Q)))
  k = qkv[:, :, D:2 * D]      # (TN, T, D)  key    (relu(fc22(STE_P)))
  v = qkv[:, :, 2 * D:3 * D]  # (TN, T, D)  value  (relu(fc23(X)))

  lane = jax.lax.broadcasted_iota(jnp.int32, (1, D), 1)         # lane index 0..D-1
  scale = 1.0 / (float(d) ** 0.5)

  # Only needed when the time axes were padded (P != Q): phantom keys -> -inf.
  if P < T:
    kpos = jax.lax.broadcasted_iota(jnp.int32, (1, T), 1)
    key_bias = jnp.where(kpos < P, 0.0, -1e30)                  # (1, T)
  else:
    key_bias = None

  acc = jnp.zeros((TN, T, D), jnp.float32)
  for h in range(K):  # static unroll over heads (K is small)
    # Constant 0/1 lane mask selects head h without sub-128-lane slices/concats.
    mask = jnp.logical_and(lane >= h * d, lane < (h + 1) * d).astype(jnp.float32)
    att = jnp.einsum('nqd,npd->nqp', q * mask, k,
                     preferred_element_type=jnp.float32) * scale  # (TN, T, T)
    if key_bias is not None:
      att = att + key_bias
    att = att - jnp.max(att, axis=-1, keepdims=True)
    e = jnp.exp(att)
    att = e * pl.reciprocal(jnp.sum(e, axis=-1, keepdims=True), approx=True)
    acc = acc + jnp.einsum('nqp,npd->nqd', att, v,
                           preferred_element_type=jnp.float32) * mask

  heads = acc.reshape(TN * T, D)                                 # rows = n*T + q

  h1 = jnp.maximum(
      jnp.dot(heads, w24_ref[...],
              preferred_element_type=jnp.float32) + b24_ref[...], 0.0)
  out = jnp.dot(h1, w25_ref[...],
                preferred_element_type=jnp.float32) + b25_ref[...]
  out_ref[0] = out.astype(out_ref.dtype)


def _pick_tn(N, T):
  """Largest vertex-tile <= N/2 whose row count is a sublane multiple."""
  for tn in range(max(1, N // 2), 0, -1):
    if N % tn == 0 and (tn * T) % 8 == 0:
      return tn
  return N  # full-extent block is always legal


def transform_attention(X, STE_P, STE_Q, params, K, d, tn=None):
  """X, STE_P: (B, P, N, D); STE_Q: (B, Q, N, D) -> (B, Q, N, D)."""
  B, P, N, D = X.shape
  Q = STE_Q.shape[1]
  assert D == K * d
  T = max(P, Q)

  # Vertex-major layout (B, N, T, D) is done wrapper-side so the kernel has no
  # sublane transposes; this is XLA layout plumbing, not compute hoisting.
  def to_vertex_major(a, t):
    a = jnp.transpose(a, (0, 2, 1, 3))                    # (B, N, t, D)
    if t < T:
      a = jnp.pad(a, ((0, 0), (0, 0), (0, T - t), (0, 0)))
    return a.reshape(B, N * T, D)

  SQv = to_vertex_major(STE_Q, Q)
  SPv = to_vertex_major(STE_P, P)
  Xv = to_vertex_major(X, P)
  qkvx = jnp.concatenate([SQv, SPv, Xv], axis=-1)         # (B, N*T, 3D)

  # Block-diagonal fused weight / bias: one (3D,3D) MXU pass for fc21/fc22/fc23.
  wqkv = jnp.zeros((3 * D, 3 * D), jnp.float32)
  wqkv = wqkv.at[0:D, 0:D].set(params["w21"].T)
  wqkv = wqkv.at[D:2 * D, D:2 * D].set(params["w22"].T)
  wqkv = wqkv.at[2 * D:3 * D, 2 * D:3 * D].set(params["w23"].T)
  bqkv = jnp.concatenate(
      [params["b21"], params["b22"], params["b23"]]).reshape(1, 3 * D)
  w24 = params["w24"].T
  b24 = params["b24"].reshape(1, D)
  w25 = params["w25"].T
  b25 = params["b25"].reshape(1, D)

  if tn is None:
    tn = _pick_tn(N, T)
  NV = N // tn

  # Advisory cost for XLA scheduling around this (tiny) custom call.
  flops = (B * N * T * 2 * (3 * D) * (3 * D)      # fused qkv projection
           + B * K * N * T * T * 2 * D * 2        # attention scores + att @ V
           + B * N * T * 2 * D * D * 2)           # fc24 + fc25
  transc = B * K * N * T * T + B * K * N * T      # exp + approx reciprocal
  bytes_acc = 4 * (B * N * T * 3 * D              # fused input slab
                   + B * N * T * D                # output
                   + (3 * D) * (3 * D) + 3 * D    # fused weight + bias
                   + 2 * (D * D + D))             # fc24 / fc25

  kernel = functools.partial(_transform_attention_kernel,
                             K=K, d=d, TN=tn, T=T, P=P)

  seq_block = (1, tn * T, 3 * D)
  out_block = (1, tn * T, D)

  out_flat = pl.pallas_call(
      kernel,
      out_shape=jax.ShapeDtypeStruct((B, N * T, D), X.dtype),
      grid_spec=pltpu.PrefetchScalarGridSpec(
          num_scalar_prefetch=0,
          grid=(B, NV),
          in_specs=[
              pl.BlockSpec(seq_block, lambda b, vtile: (b, vtile, 0)),    # [SQ|SP|X]
              pl.BlockSpec((3 * D, 3 * D), lambda b, vtile: (0, 0)),      # fused W
              pl.BlockSpec((1, 3 * D), lambda b, vtile: (0, 0)),          # fused b
              pl.BlockSpec((D, D), lambda b, vtile: (0, 0)),              # W24^T
              pl.BlockSpec((1, D), lambda b, vtile: (0, 0)),              # b24
              pl.BlockSpec((D, D), lambda b, vtile: (0, 0)),              # W25^T
              pl.BlockSpec((1, D), lambda b, vtile: (0, 0)),              # b25
          ],
          out_specs=pl.BlockSpec(out_block, lambda b, vtile: (b, vtile, 0)),
      ),
      compiler_params=pltpu.CompilerParams(
          dimension_semantics=("parallel", "parallel")),
      cost_estimate=pl.CostEstimate(
          flops=flops, transcendentals=transc, bytes_accessed=bytes_acc),
  )(qkvx, wqkv, bqkv, w24, b24, w25, b25)

  # (B, N*T, D) -> (B, N, T, D) -> drop padded query rows -> (B, Q, N, D).
  out = out_flat.reshape(B, N, T, D)[:, :, :Q, :]
  return jnp.transpose(out, (0, 2, 1, 3))


def reference(X, STE_P, STE_Q, params, K, d):
  """Pure-JAX mirror of the PyTorch forward (torch.Linear: y = x @ W.T + b)."""
  def lin(x, w, b):
    return x @ w.T + b

  query = jax.nn.relu(lin(STE_Q, params["w21"], params["b21"]))
  key = jax.nn.relu(lin(STE_P, params["w22"], params["b22"]))
  value = jax.nn.relu(lin(X, params["w23"], params["b23"]))

  query = jnp.concatenate(jnp.split(query, K, axis=-1), axis=0)  # (K*B, Q, N, d)
  key = jnp.concatenate(jnp.split(key, K, axis=-1), axis=0)      # (K*B, P, N, d)
  value = jnp.concatenate(jnp.split(value, K, axis=-1), axis=0)  # (K*B, P, N, d)

  query = jnp.swapaxes(query, 2, 1)                              # (K*B, N, Q, d)
  key = jnp.swapaxes(jnp.swapaxes(key, 1, 2), 2, 3)              # (K*B, N, d, P)
  value = jnp.swapaxes(value, 2, 1)                              # (K*B, N, P, d)

  att = (query @ key) / (float(d) ** 0.5)
  att = jax.nn.softmax(att, axis=-1)
  out = att @ value                                              # (K*B, N, Q, d)
  out = jnp.swapaxes(out, 2, 1)                                  # (K*B, Q, N, d)
  out = jnp.concatenate(jnp.split(out, K, axis=0), axis=-1)      # (B, Q, N, D)
  out = lin(jax.nn.relu(lin(out, params["w24"], params["b24"])),
            params["w25"], params["b25"])
  return out


def init_params(key, D):
  names = ["w21", "w22", "w23", "w24", "w25"]
  params = {}
  for i, name in enumerate(names):
    kw, kb = jax.random.split(jax.random.fold_in(key, i))
    params[name] = (jax.random.normal(kw, (D, D), jnp.float32) * 0.1)
    params["b" + name[1:]] = (jax.random.normal(kb, (D,), jnp.float32) * 0.1)
  return params


if __name__ == "__main__":
  # Small, module-consistent shapes.
  K, d = 2, 16
  D = K * d                  # 32
  B, P, Q, N = 2, 8, 8, 4    # batch, num_his, num_pred, num_vertex

  key = jax.random.PRNGKey(0)
  kx, kp, kq, kparams = jax.random.split(key, 4)
  X = jax.random.normal(kx, (B, P, N, D), jnp.float32)
  STE_P = jax.random.normal(kp, (B, P, N, D), jnp.float32)
  STE_Q = jax.random.normal(kq, (B, Q, N, D), jnp.float32)
  params = init_params(kparams, D)

  out = transform_attention(X, STE_P, STE_Q, params, K, d)
  out = jax.block_until_ready(out)

  ref = reference(X, STE_P, STE_Q, params, K, d)
  # Tolerance 5e-4: pl.reciprocal(approx=True) adds ~2^-12 relative error to the
  # softmax normalization; everything else is exact f32-accumulated MXU math.
  np.testing.assert_allclose(np.asarray(out), np.asarray(ref),
                             rtol=5e-4, atol=5e-4)
  print("KERNEL_OK")
</pallas_src>

<mosaic_0001>
module attributes {stable_mosaic.version = 11 : i64} {
  func.func @_transform_attention_kernel(%arg0: i32, %arg1: i32, %arg2: memref<1x16x96xf32, #tpu.memory_space<vmem>>, %arg3: memref<96x96xf32, #tpu.memory_space<vmem>>, %arg4: memref<1x96xf32, #tpu.memory_space<vmem>>, %arg5: memref<32x32xf32, #tpu.memory_space<vmem>>, %arg6: memref<1x32xf32, #tpu.memory_space<vmem>>, %arg7: memref<32x32xf32, #tpu.memory_space<vmem>>, %arg8: memref<1x32xf32, #tpu.memory_space<vmem>>, %arg9: memref<1x16x32xf32, #tpu.memory_space<vmem>>) attributes {dimension_semantics = [#tpu.dimension_semantics<parallel>, #tpu.dimension_semantics<parallel>], iteration_bounds = array<i64: 2, 2>, scalar_prefetch = 0 : i64, scratch_operands = 0 : i64, tpu.core_type = #tpu.core_type<tc>, window_params = [{transform_indices = @transform_0, window_bounds = array<i64: 1, 16, 96>}, {pipeline_mode = #tpu.pipeline_mode<synchronous>, transform_indices = @transform_1, window_bounds = array<i64: 96, 96>}, {pipeline_mode = #tpu.pipeline_mode<synchronous>, transform_indices = @transform_2, window_bounds = array<i64: 1, 96>}, {pipeline_mode = #tpu.pipeline_mode<synchronous>, transform_indices = @transform_3, window_bounds = array<i64: 32, 32>}, {pipeline_mode = #tpu.pipeline_mode<synchronous>, transform_indices = @transform_4, window_bounds = array<i64: 1, 32>}, {pipeline_mode = #tpu.pipeline_mode<synchronous>, transform_indices = @transform_5, window_bounds = array<i64: 32, 32>}, {pipeline_mode = #tpu.pipeline_mode<synchronous>, transform_indices = @transform_6, window_bounds = array<i64: 1, 32>}, {transform_indices = @transform_7, window_bounds = array<i64: 1, 16, 32>}]} {
    %c0 = arith.constant 0 : index
    %c0_0 = arith.constant 0 : index
    %c0_1 = arith.constant 0 : index
    %0 = vector.load %arg2[%c0, %c0_0, %c0_1] : memref<1x16x96xf32, #tpu.memory_space<vmem>>, vector<1x16x96xf32>
    %1 = vector.shape_cast %0 : vector<1x16x96xf32> to vector<16x96xf32>
    %c0_2 = arith.constant 0 : index
    %c0_3 = arith.constant 0 : index
    %2 = vector.load %arg3[%c0_2, %c0_3] : memref<96x96xf32, #tpu.memory_space<vmem>>, vector<96x96xf32>
    %cst = arith.constant dense<0.000000e+00> : vector<16x96xf32>
    %3 = tpu.matmul %1, %2, %cst {dimension_numbers = #tpu.dot_dimension_numbers<[1], [0], [0], [1], [0, 0, 1, 1], [], []>} : vector<16x96xf32>, vector<96x96xf32>, vector<16x96xf32> -> vector<16x96xf32>
    %c0_4 = arith.constant 0 : index
    %c0_5 = arith.constant 0 : index
    %4 = vector.load %arg4[%c0_4, %c0_5] : memref<1x96xf32, #tpu.memory_space<vmem>>, vector<1x96xf32>
    %5 = vector.broadcast %4 : vector<1x96xf32> to vector<16x96xf32>
    %6 = arith.addf %3, %5 : vector<16x96xf32>
    %cst_6 = arith.constant 0.000000e+00 : f32
    %7 = vector.broadcast %cst_6 : f32 to vector<16x96xf32>
    %8 = arith.maximumf %6, %7 : vector<16x96xf32>
    %9 = vector.shape_cast %8 : vector<16x96xf32> to vector<2x8x96xf32>
    %10 = vector.extract_strided_slice %9 {offsets = [0, 0, 0], sizes = [2, 8, 32], strides = [1, 1, 1]} : vector<2x8x96xf32> to vector<2x8x32xf32>
    %11 = vector.extract_strided_slice %9 {offsets = [0, 0, 32], sizes = [2, 8, 32], strides = [1, 1, 1]} : vector<2x8x96xf32> to vector<2x8x32xf32>
    %12 = vector.extract_strided_slice %9 {offsets = [0, 0, 64], sizes = [2, 8, 32], strides = [1, 1, 1]} : vector<2x8x96xf32> to vector<2x8x32xf32>
    %13 = tpu.iota {dimensions = array<i32: 1>} : vector<1x32xi32>
    %cst_7 = arith.constant 0.000000e+00 : f32
    %14 = vector.broadcast %cst_7 : f32 to vector<2x8x32xf32>
    %c0_i32 = arith.constant 0 : i32
    %15 = vector.broadcast %c0_i32 : i32 to vector<1x32xi32>
    %16 = arith.cmpi sge, %13, %15 : vector<1x32xi32>
    %c16_i32 = arith.constant 16 : i32
    %17 = vector.broadcast %c16_i32 : i32 to vector<1x32xi32>
    %18 = arith.cmpi slt, %13, %17 : vector<1x32xi32>
    %19 = arith.andi %16, %18 : vector<1x32xi1>
    %20 = arith.extui %19 : vector<1x32xi1> to vector<1x32xi32>
    %21 = arith.sitofp %20 : vector<1x32xi32> to vector<1x32xf32>
    %22 = vector.shape_cast %21 : vector<1x32xf32> to vector<1x1x32xf32>
    %23 = vector.broadcast %22 : vector<1x1x32xf32> to vector<2x8x32xf32>
    %24 = arith.mulf %10, %23 : vector<2x8x32xf32>
    "tpu.trace_start"() <{level = 10 : i32, message = "nqd,npd->nqp"}> : () -> ()
    %cst_8 = arith.constant dense<0.000000e+00> : vector<2x8x8xf32>
    %25 = tpu.matmul %24, %11, %cst_8 {dimension_numbers = #tpu.dot_dimension_numbers<[2], [2], [1], [1], [0, 0, 0, 1, 1, 1], [0], [0]>} : vector<2x8x32xf32>, vector<2x8x32xf32>, vector<2x8x8xf32> -> vector<2x8x8xf32>
    "tpu.trace_stop"() : () -> ()
    %cst_9 = arith.constant 2.500000e-01 : f32
    %26 = vector.broadcast %cst_9 : f32 to vector<2x8x8xf32>
    %27 = arith.mulf %25, %26 : vector<2x8x8xf32>
    %cst_10 = arith.constant dense<0xFF800000> : vector<2x8xf32>
    %28 = vector.multi_reduction <maximumf>, %27, %cst_10 [2] : vector<2x8x8xf32> to vector<2x8xf32>
    %29 = vector.shape_cast %28 : vector<2x8xf32> to vector<2x8x1xf32>
    %30 = vector.broadcast %29 : vector<2x8x1xf32> to vector<2x8x8xf32>
    %31 = arith.subf %27, %30 : vector<2x8x8xf32>
    %32 = math.exp %31 : vector<2x8x8xf32>
    %cst_11 = arith.constant dense<0.000000e+00> : vector<2x8xf32>
    %33 = vector.multi_reduction <add>, %32, %cst_11 [2] : vector<2x8x8xf32> to vector<2x8xf32>
    %34 = vector.shape_cast %33 : vector<2x8xf32> to vector<2x8x1xf32>
    %35 = tpu.reciprocal %34 {approx = true} : vector<2x8x1xf32> -> vector<2x8x1xf32>
    %36 = vector.broadcast %35 : vector<2x8x1xf32> to vector<2x8x8xf32>
    %37 = arith.mulf %32, %36 : vector<2x8x8xf32>
    "tpu.trace_start"() <{level = 10 : i32, message = "nqp,npd->nqd"}> : () -> ()
    %cst_12 = arith.constant dense<0.000000e+00> : vector<2x8x32xf32>
    %38 = tpu.matmul %37, %12, %cst_12 {dimension_numbers = #tpu.dot_dimension_numbers<[2], [1], [1], [2], [0, 0, 0, 1, 1, 2], [0], [0]>} : vector<2x8x8xf32>, vector<2x8x32xf32>, vector<2x8x32xf32> -> vector<2x8x32xf32>
    "tpu.trace_stop"() : () -> ()
    %39 = vector.shape_cast %21 : vector<1x32xf32> to vector<1x1x32xf32>
    %40 = vector.broadcast %39 : vector<1x1x32xf32> to vector<2x8x32xf32>
    %41 = arith.mulf %38, %40 : vector<2x8x32xf32>
    %42 = arith.addf %14, %41 : vector<2x8x32xf32>
    %c16_i32_13 = arith.constant 16 : i32
    %43 = vector.broadcast %c16_i32_13 : i32 to vector<1x32xi32>
    %44 = arith.cmpi sge, %13, %43 : vector<1x32xi32>
    %c32_i32 = arith.constant 32 : i32
    %45 = vector.broadcast %c32_i32 : i32 to vector<1x32xi32>
    %46 = arith.cmpi slt, %13, %45 : vector<1x32xi32>
    %47 = arith.andi %44, %46 : vector<1x32xi1>
    %48 = arith.extui %47 : vector<1x32xi1> to vector<1x32xi32>
    %49 = arith.sitofp %48 : vector<1x32xi32> to vector<1x32xf32>
    %50 = vector.shape_cast %49 : vector<1x32xf32> to vector<1x1x32xf32>
    %51 = vector.broadcast %50 : vector<1x1x32xf32> to vector<2x8x32xf32>
    %52 = arith.mulf %10, %51 : vector<2x8x32xf32>
    "tpu.trace_start"() <{level = 10 : i32, message = "nqd,npd->nqp"}> : () -> ()
    %cst_14 = arith.constant dense<0.000000e+00> : vector<2x8x8xf32>
    %53 = tpu.matmul %52, %11, %cst_14 {dimension_numbers = #tpu.dot_dimension_numbers<[2], [2], [1], [1], [0, 0, 0, 1, 1, 1], [0], [0]>} : vector<2x8x32xf32>, vector<2x8x32xf32>, vector<2x8x8xf32> -> vector<2x8x8xf32>
    "tpu.trace_stop"() : () -> ()
    %cst_15 = arith.constant 2.500000e-01 : f32
    %54 = vector.broadcast %cst_15 : f32 to vector<2x8x8xf32>
    %55 = arith.mulf %53, %54 : vector<2x8x8xf32>
    %cst_16 = arith.constant dense<0xFF800000> : vector<2x8xf32>
    %56 = vector.multi_reduction <maximumf>, %55, %cst_16 [2] : vector<2x8x8xf32> to vector<2x8xf32>
    %57 = vector.shape_cast %56 : vector<2x8xf32> to vector<2x8x1xf32>
    %58 = vector.broadcast %57 : vector<2x8x1xf32> to vector<2x8x8xf32>
    %59 = arith.subf %55, %58 : vector<2x8x8xf32>
    %60 = math.exp %59 : vector<2x8x8xf32>
    %cst_17 = arith.constant dense<0.000000e+00> : vector<2x8xf32>
    %61 = vector.multi_reduction <add>, %60, %cst_17 [2] : vector<2x8x8xf32> to vector<2x8xf32>
    %62 = vector.shape_cast %61 : vector<2x8xf32> to vector<2x8x1xf32>
    %63 = tpu.reciprocal %62 {approx = true} : vector<2x8x1xf32> -> vector<2x8x1xf32>
    %64 = vector.broadcast %63 : vector<2x8x1xf32> to vector<2x8x8xf32>
    %65 = arith.mulf %60, %64 : vector<2x8x8xf32>
    "tpu.trace_start"() <{level = 10 : i32, message = "nqp,npd->nqd"}> : () -> ()
    %cst_18 = arith.constant dense<0.000000e+00> : vector<2x8x32xf32>
    %66 = tpu.matmul %65, %12, %cst_18 {dimension_numbers = #tpu.dot_dimension_numbers<[2], [1], [1], [2], [0, 0, 0, 1, 1, 2], [0], [0]>} : vector<2x8x8xf32>, vector<2x8x32xf32>, vector<2x8x32xf32> -> vector<2x8x32xf32>
    "tpu.trace_stop"() : () -> ()
    %67 = vector.shape_cast %49 : vector<1x32xf32> to vector<1x1x32xf32>
    %68 = vector.broadcast %67 : vector<1x1x32xf32> to vector<2x8x32xf32>
    %69 = arith.mulf %66, %68 : vector<2x8x32xf32>
    %70 = arith.addf %42, %69 : vector<2x8x32xf32>
    %71 = vector.shape_cast %70 : vector<2x8x32xf32> to vector<16x32xf32>
    %c0_19 = arith.constant 0 : index
    %c0_20 = arith.constant 0 : index
    %72 = vector.load %arg5[%c0_19, %c0_20] : memref<32x32xf32, #tpu.memory_space<vmem>>, vector<32x32xf32>
    %cst_21 = arith.constant dense<0.000000e+00> : vector<16x32xf32>
    %73 = tpu.matmul %71, %72, %cst_21 {dimension_numbers = #tpu.dot_dimension_numbers<[1], [0], [0], [1], [0, 0, 1, 1], [], []>} : vector<16x32xf32>, vector<32x32xf32>, vector<16x32xf32> -> vector<16x32xf32>
    %c0_22 = arith.constant 0 : index
    %c0_23 = arith.constant 0 : index
    %74 = vector.load %arg6[%c0_22, %c0_23] : memref<1x32xf32, #tpu.memory_space<vmem>>, vector<1x32xf32>
    %75 = vector.broadcast %74 : vector<1x32xf32> to vector<16x32xf32>
    %76 = arith.addf %73, %75 : vector<16x32xf32>
    %cst_24 = arith.constant 0.000000e+00 : f32
    %77 = vector.broadcast %cst_24 : f32 to vector<16x32xf32>
    %78 = arith.maximumf %76, %77 : vector<16x32xf32>
    %c0_25 = arith.constant 0 : index
    %c0_26 = arith.constant 0 : index
    %79 = vector.load %arg7[%c0_25, %c0_26] : memref<32x32xf32, #tpu.memory_space<vmem>>, vector<32x32xf32>
    %cst_27 = arith.constant dense<0.000000e+00> : vector<16x32xf32>
    %80 = tpu.matmul %78, %79, %cst_27 {dimension_numbers = #tpu.dot_dimension_numbers<[1], [0], [0], [1], [0, 0, 1, 1], [], []>} : vector<16x32xf32>, vector<32x32xf32>, vector<16x32xf32> -> vector<16x32xf32>
    %c0_28 = arith.constant 0 : index
    %c0_29 = arith.constant 0 : index
    %81 = vector.load %arg8[%c0_28, %c0_29] : memref<1x32xf32, #tpu.memory_space<vmem>>, vector<1x32xf32>
    %82 = vector.broadcast %81 : vector<1x32xf32> to vector<16x32xf32>
    %83 = arith.addf %80, %82 : vector<16x32xf32>
    %c0_30 = arith.constant 0 : index
    %c0_31 = arith.constant 0 : index
    %c0_32 = arith.constant 0 : index
    %84 = vector.load %arg9[%c0_30, %c0_31, %c0_32] : memref<1x16x32xf32, #tpu.memory_space<vmem>>, vector<1x16x32xf32>
    %85 = vector.shape_cast %84 : vector<1x16x32xf32> to vector<16x32xf32>
    %86 = vector.shape_cast %83 : vector<16x32xf32> to vector<1x16x32xf32>
    tpu.vector_store %arg9[%c0_30, %c0_31, %c0_32], %86 {strides = array<i32>} : memref<1x16x32xf32, #tpu.memory_space<vmem>>, vector<1x16x32xf32>,
    return
  }
  func.func @transform_0(%arg0: i32, %arg1: i32) -> (i32, i32, i32) {
    %c0_i32 = arith.constant 0 : i32
    %c0_i32_0 = arith.constant 0 : i32
    return %arg0, %arg1, %c0_i32 : i32, i32, i32
  }
  func.func @transform_1(%arg0: i32, %arg1: i32) -> (i32, i32) {
    %c0_i32 = arith.constant 0 : i32
    %c0_i32_0 = arith.constant 0 : i32
    %c0_i32_1 = arith.constant 0 : i32
    return %c0_i32, %c0_i32_0 : i32, i32
  }
  func.func @transform_2(%arg0: i32, %arg1: i32) -> (i32, i32) {
    %c0_i32 = arith.constant 0 : i32
    %c0_i32_0 = arith.constant 0 : i32
    %c0_i32_1 = arith.constant 0 : i32
    return %c0_i32, %c0_i32_0 : i32, i32
  }
  func.func @transform_3(%arg0: i32, %arg1: i32) -> (i32, i32) {
    %c0_i32 = arith.constant 0 : i32
    %c0_i32_0 = arith.constant 0 : i32
    %c0_i32_1 = arith.constant 0 : i32
    return %c0_i32, %c0_i32_0 : i32, i32
  }
  func.func @transform_4(%arg0: i32, %arg1: i32) -> (i32, i32) {
    %c0_i32 = arith.constant 0 : i32
    %c0_i32_0 = arith.constant 0 : i32
    %c0_i32_1 = arith.constant 0 : i32
    return %c0_i32, %c0_i32_0 : i32, i32
  }
  func.func @transform_5(%arg0: i32, %arg1: i32) -> (i32, i32) {
    %c0_i32 = arith.constant 0 : i32
    %c0_i32_0 = arith.constant 0 : i32
    %c0_i32_1 = arith.constant 0 : i32
    return %c0_i32, %c0_i32_0 : i32, i32
  }
  func.func @transform_6(%arg0: i32, %arg1: i32) -> (i32, i32) {
    %c0_i32 = arith.constant 0 : i32
    %c0_i32_0 = arith.constant 0 : i32
    %c0_i32_1 = arith.constant 0 : i32
    return %c0_i32, %c0_i32_0 : i32, i32
  }
  func.func @transform_7(%arg0: i32, %arg1: i32) -> (i32, i32, i32) {
    %c0_i32 = arith.constant 0 : i32
    %c0_i32_0 = arith.constant 0 : i32
    return %arg0, %arg1, %c0_i32 : i32, i32, i32
  }
}

</mosaic_0001>

<llo_original>
// kernel: tpu_custom_call.1
$region0: #{tpu_custom_call.1}
  #allocation0 [shape = 'u32[]', space=smem, size = 0x4, offset = 0x4, fixed_abs, tag = 'smem constant byte address 0x4 - core index']
  #allocation1 [shape = 'u32[144,128]{1,0:T(1,128)}', space=vmem, size = 0x12000, scoped, tag = 'internal scratch']
  %s0 = inlined_call_operand.hbm [shape: f32[2,32,96], index: 0, kind: input, shape index: {}]
  %s1 = inlined_call_operand.hbm [shape: f32[96,96], index: 1, kind: input, shape index: {}]
  %s2 = inlined_call_operand.vmem [shape: f32[1,96], index: 2, kind: input, shape index: {}]
  %s3 = inlined_call_operand.hbm [shape: f32[32,32], index: 3, kind: input, shape index: {}]
  %s4 = inlined_call_operand.vmem [shape: f32[1,32], index: 4, kind: input, shape index: {}]
  %s5 = inlined_call_operand.hbm [shape: f32[32,32], index: 5, kind: input, shape index: {}]
  %s6 = inlined_call_operand.vmem [shape: f32[1,32], index: 6, kind: input, shape index: {}]
  %s7 = inlined_call_operand.hbm [shape: f32[2,32,32], index: 7, kind: output, shape index: {}]
  %s8 = sld [smem:[#allocation0]]
  $region77: #{tpu_custom_call.1} parent=0
    _
  %s10 = ssub.s32 1, %s8
  %s11 = scalar_select 0, %s10, %s8
  $region1: #{tpu_custom_call.1} parent=0
    #allocation2 [shape = 'u8[16384]{0}', space=vmem, size = 0x4000, scoped, tag = 'input window, operand 0']
    #allocation3 [shape = 's32[2]{0}', space=sflag, size = 0x8, scoped, tag = 'scoped memory for tpu_custom_call.1']
    #allocation4 [shape = 's32[2]{0}', space=sflag, size = 0x8, scoped, tag = 'scoped memory for tpu_custom_call.1']
    #allocation5 [shape = 'u8[49152]{0}', space=vmem, size = 0xc000, scoped, tag = 'input window, operand 1, single buffered']
    #allocation6 [shape = 's32[1]{0}', space=sflag, size = 0x4, scoped, tag = 'scoped memory for tpu_custom_call.1']
    #allocation7 [shape = 'u8[16384]{0}', space=vmem, size = 0x4000, scoped, tag = 'input window, operand 3, single buffered']
    #allocation8 [shape = 'u8[16384]{0}', space=vmem, size = 0x4000, scoped, tag = 'input window, operand 5, single buffered']
    #allocation9 [shape = 's32[1]{0}', space=sflag, size = 0x4, scoped, tag = 'scoped memory for tpu_custom_call.1']
    #allocation10 [shape = 'u8[16384]{0}', space=vmem, size = 0x4000, scoped, tag = 'output window, operand 0']
    %12 = vsyncpa [#allocation3], 0
    %s13 = scalar_lea.sflag [#allocation3], 1
    %14 = vsyncpa %s13, 0
    %15 = vsyncpa [#allocation6], 0
    %16 = vsyncpa [#allocation9], 0
    %17 = vsyncpa [#allocation4], 0
    %s18 = scalar_lea.sflag [#allocation4], 1
    %19 = vsyncpa %s18, 0
    loop: start=0, step=1, limit=6
    $region2: #{tpu_custom_call.1} parent=1 // loop_pre_header
      _
    $region3: #{tpu_custom_call.1} parent=1 // loop_header
      %s21 = sphi 0, %s25
      %p22 = scmp.ge.s32.totalorder %s21, 6
      %s28 = sphi 0, %s40
      %s29 = sphi 0, %s36
      %s30 = sphi 0, %s28
      %s31 = sphi 0, %s29
      %s32 = sphi 0, %s30
      %s33 = sphi 0, %s31
      %s45 = sphi 0, %s47
      %s48 = sphi 0, %s45
      %s49 = sphi 0, %s48
      %s65 = sphi 0, %s49
      %s69 = sphi 0, %s69
      %s71 = sphi 0, %s69
      %s72 = sphi 0, %s71
      %s86 = sphi 0, %s72
      %s90 = sphi 0, %s90
      %s92 = sphi 0, %s90
      %s93 = sphi 0, %s92
      %s107 = sphi 0, %s93
      %s111 = sphi 0, %s111
      %s113 = sphi 0, %s111
      %s114 = sphi 0, %s113
      %s128 = sphi 0, %s114
      %s132 = sphi 0, %s132
      %s134 = sphi 0, %s132
      %s135 = sphi 0, %s134
      %s149 = sphi 0, %s135
      %s153 = sphi 0, %s153
      %s155 = sphi 0, %s153
      %s156 = sphi 0, %s155
      %s170 = sphi 0, %s156
      %s174 = sphi 0, %s174
      %s176 = sphi 0, %s174
      %s177 = sphi 0, %s176
      %s191 = sphi 0, %s177
      %s199 = sphi 0, %s201
      %s202 = sphi 0, %s199
      %s203 = sphi 0, %s202
      %s219 = sphi 0, %s203
    $region4: #{tpu_custom_call.1} parent=1 // loop_header_branch
      %24 = sbr.rel (%p22) target = $region8
    $region5: #{tpu_custom_call.1} parent=1 // loop_body
      %s26 = ssub.s32 %s21, 1
      %s27 = ssub.s32 %s21, 2
      %s34 = sadd.s32 1, %s29
      %p35 = scmp.ge.s32.totalorder %s34, 2
      %s36 = scalar_select %p35, 0, %s34
      %s37 = sadd.s32 1, %s28
      %s38 = scalar_select %p35, %s37, %s28
      %p39 = scmp.ge.s32.totalorder %s38, 2
      %s40 = scalar_select %p39, 0, %s38
      %s41 = ssub.s32 %s28, %s40
      %s42 = ssub.s32 %s29, %s36
      %s43 = sor.u32 %s41, %s42
      %p44 = scmp.eq.s32.totalorder %s43, 0
      %s46 = sadd.s32 %s45, 1
      %s47 = scalar_select %p44, %s45, %s46
      %p50 = pneg %p44
      %p51 = scmp.eq.s32.totalorder %s21, 3
      %p52 = por %p50, %p51
      %p53 = scmp.ne.s32.totalorder %s45, %s48
      %p54 = scmp.eq.s32.totalorder %s21, 0
      %p55 = por %p53, %p54
      %p56 = scmp.ne.s32.totalorder %s45, %s48
      %p57 = scmp.eq.s32.totalorder %s26, 3
      %p58 = por %p56, %p57
      %p59 = scmp.ne.s32.totalorder %s48, %s49
      %p60 = scmp.eq.s32.totalorder %s26, 0
      %p61 = por %p59, %p60
      %p62 = scmp.ne.s32.totalorder %s48, %s49
      %p63 = scmp.eq.s32.totalorder %s27, 3
      %p64 = por %p62, %p63
      %p66 = scmp.ne.s32.totalorder %s49, %s65
      %p67 = scmp.eq.s32.totalorder %s27, 0
      %p68 = por %p66, %p67
      %s70 = sadd.s32 %s69, 1
      %p73 = scmp.eq.s32.totalorder %s21, 3
      %p74 = scmp.ne.s32.totalorder %s69, %s71
      %p75 = scmp.eq.s32.totalorder %s21, 0
      %p76 = por %p74, %p75
      %p77 = scmp.ne.s32.totalorder %s69, %s71
      %p78 = scmp.eq.s32.totalorder %s26, 3
      %p79 = por %p77, %p78
      %p80 = scmp.ne.s32.totalorder %s71, %s72
      %p81 = scmp.eq.s32.totalorder %s26, 0
      %p82 = por %p80, %p81
      %p83 = scmp.ne.s32.totalorder %s71, %s72
      %p84 = scmp.eq.s32.totalorder %s27, 3
      %p85 = por %p83, %p84
      %p87 = scmp.ne.s32.totalorder %s72, %s86
      %p88 = scmp.eq.s32.totalorder %s27, 0
      %p89 = por %p87, %p88
      %s91 = sadd.s32 %s90, 1
      %p94 = scmp.eq.s32.totalorder %s21, 3
      %p95 = scmp.ne.s32.totalorder %s90, %s92
      %p96 = scmp.eq.s32.totalorder %s21, 0
      %p97 = por %p95, %p96
      %p98 = scmp.ne.s32.totalorder %s90, %s92
      %p99 = scmp.eq.s32.totalorder %s26, 3
      %p100 = por %p98, %p99
      %p101 = scmp.ne.s32.totalorder %s92, %s93
      %p102 = scmp.eq.s32.totalorder %s26, 0
      %p103 = por %p101, %p102
      %p104 = scmp.ne.s32.totalorder %s92, %s93
      %p105 = scmp.eq.s32.totalorder %s27, 3
      %p106 = por %p104, %p105
      %p108 = scmp.ne.s32.totalorder %s93, %s107
      %p109 = scmp.eq.s32.totalorder %s27, 0
      %p110 = por %p108, %p109
      %s112 = sadd.s32 %s111, 1
      %p115 = scmp.eq.s32.totalorder %s21, 3
      %p116 = scmp.ne.s32.totalorder %s111, %s113
      %p117 = scmp.eq.s32.totalorder %s21, 0
      %p118 = por %p116, %p117
      %p119 = scmp.ne.s32.totalorder %s111, %s113
      %p120 = scmp.eq.s32.totalorder %s26, 3
      %p121 = por %p119, %p120
      %p122 = scmp.ne.s32.totalorder %s113, %s114
      %p123 = scmp.eq.s32.totalorder %s26, 0
      %p124 = por %p122, %p123
      %p125 = scmp.ne.s32.totalorder %s113, %s114
      %p126 = scmp.eq.s32.totalorder %s27, 3
      %p127 = por %p125, %p126
      %p129 = scmp.ne.s32.totalorder %s114, %s128
      %p130 = scmp.eq.s32.totalorder %s27, 0
      %p131 = por %p129, %p130
      %s133 = sadd.s32 %s132, 1
      %p136 = scmp.eq.s32.totalorder %s21, 3
      %p137 = scmp.ne.s32.totalorder %s132, %s134
      %p138 = scmp.eq.s32.totalorder %s21, 0
      %p139 = por %p137, %p138
      %p140 = scmp.ne.s32.totalorder %s132, %s134
      %p141 = scmp.eq.s32.totalorder %s26, 3
      %p142 = por %p140, %p141
      %p143 = scmp.ne.s32.totalorder %s134, %s135
      %p144 = scmp.eq.s32.totalorder %s26, 0
      %p145 = por %p143, %p144
      %p146 = scmp.ne.s32.totalorder %s134, %s135
      %p147 = scmp.eq.s32.totalorder %s27, 3
      %p148 = por %p146, %p147
      %p150 = scmp.ne.s32.totalorder %s135, %s149
      %p151 = scmp.eq.s32.totalorder %s27, 0
      %p152 = por %p150, %p151
      %s154 = sadd.s32 %s153, 1
      %p157 = scmp.eq.s32.totalorder %s21, 3
      %p158 = scmp.ne.s32.totalorder %s153, %s155
      %p159 = scmp.eq.s32.totalorder %s21, 0
      %p160 = por %p158, %p159
      %p161 = scmp.ne.s32.totalorder %s153, %s155
      %p162 = scmp.eq.s32.totalorder %s26, 3
      %p163 = por %p161, %p162
      %p164 = scmp.ne.s32.totalorder %s155, %s156
      %p165 = scmp.eq.s32.totalorder %s26, 0
      %p166 = por %p164, %p165
      %p167 = scmp.ne.s32.totalorder %s155, %s156
      %p168 = scmp.eq.s32.totalorder %s27, 3
      %p169 = por %p167, %p168
      %p171 = scmp.ne.s32.totalorder %s156, %s170
      %p172 = scmp.eq.s32.totalorder %s27, 0
      %p173 = por %p171, %p172
      %s175 = sadd.s32 %s174, 1
      %p178 = scmp.eq.s32.totalorder %s21, 3
      %p179 = scmp.ne.s32.totalorder %s174, %s176
      %p180 = scmp.eq.s32.totalorder %s21, 0
      %p181 = por %p179, %p180
      %p182 = scmp.ne.s32.totalorder %s174, %s176
      %p183 = scmp.eq.s32.totalorder %s26, 3
      %p184 = por %p182, %p183
      %p185 = scmp.ne.s32.totalorder %s176, %s177
      %p186 = scmp.eq.s32.totalorder %s26, 0
      %p187 = por %p185, %p186
      %p188 = scmp.ne.s32.totalorder %s176, %s177
      %p189 = scmp.eq.s32.totalorder %s27, 3
      %p190 = por %p188, %p189
      %p192 = scmp.ne.s32.totalorder %s177, %s191
      %p193 = scmp.eq.s32.totalorder %s27, 0
      %p194 = por %p192, %p193
      %s195 = ssub.s32 %s28, %s40
      %s196 = ssub.s32 %s29, %s36
      %s197 = sor.u32 %s195, %s196
      %p198 = scmp.eq.s32.totalorder %s197, 0
      %s200 = sadd.s32 %s199, 1
      %s201 = scalar_select %p198, %s199, %s200
      %p204 = pneg %p198
      %p205 = scmp.eq.s32.totalorder %s21, 3
      %p206 = por %p204, %p205
      %p207 = scmp.ne.s32.totalorder %s199, %s202
      %p208 = scmp.eq.s32.totalorder %s21, 0
      %p209 = por %p207, %p208
      %p210 = scmp.ne.s32.totalorder %s199, %s202
      %p211 = scmp.eq.s32.totalorder %s26, 3
      %p212 = por %p210, %p211
      %p213 = scmp.ne.s32.totalorder %s202, %s203
      %p214 = scmp.eq.s32.totalorder %s26, 0
      %p215 = por %p213, %p214
      %p216 = scmp.ne.s32.totalorder %s202, %s203
      %p217 = scmp.eq.s32.totalorder %s27, 3
      %p218 = por %p216, %p217
      %p220 = scmp.ne.s32.totalorder %s203, %s219
      %p221 = scmp.eq.s32.totalorder %s27, 0
      %p222 = por %p220, %p221
      %p223 = scmp.le.s32.totalorder 1, %s21
      %p224 = scmp.lt.s32.totalorder %s21, 5
      %p225 = pnand %p223, %p224
      %p226 = pneg %p225
      // Predicated region
      $region9: #{tpu_custom_call.1} parent=5 // pred_check
        _
      $region10: #{tpu_custom_call.1} parent=5 // pred_check_branch
        %228 = sbr.rel (%p225) target = $region12
      $region11: #{tpu_custom_call.1} parent=5 // pred_region
        %s229 = ssub.s32 %s21, 1
        // Predicated region
        $region13: #{tpu_custom_call.1} parent=11 // pred_check
          %p230 = pneg %p82
        $region14: #{tpu_custom_call.1} parent=11 // pred_check_branch
          %232 = sbr.rel (%p230) target = $region16
        $region15: #{tpu_custom_call.1} parent=11 // pred_region
          %s234 = ssub.s32 1536, 1536
          %235 = vsyncadd [#allocation6], %s234
          %s236 = sshll.u32 [#allocation5], 4
          %s237 = int_to_ptr.vmem [resolvable:$true] %s236
          %242 = dma.hbm_to_vmem [thread:$0]  %s1, 1536, %s237, [#allocation6], 128, 128, 8
        $region16: #{tpu_custom_call.1} parent=11 // pred_fallthru
          _
        // Predicated region
        $region17: #{tpu_custom_call.1} parent=11 // pred_check
          %p243 = pneg %p103
        $region18: #{tpu_custom_call.1} parent=11 // pred_check_branch
          %245 = sbr.rel (%p243) target = $region20
        $region19: #{tpu_custom_call.1} parent=11 // pred_region
          _
        $region20: #{tpu_custom_call.1} parent=11 // pred_fallthru
          _
        // Predicated region
        $region21: #{tpu_custom_call.1} parent=11 // pred_check
          %p246 = pneg %p124
        $region22: #{tpu_custom_call.1} parent=11 // pred_check_branch
          %248 = sbr.rel (%p246) target = $region24
        $region23: #{tpu_custom_call.1} parent=11 // pred_region
          %s250 = ssub.s32 512, 512
          %251 = vsyncadd [#allocation6], %s250
          %s252 = sshll.u32 [#allocation7], 4
          %s253 = int_to_ptr.vmem [resolvable:$true] %s252
          %258 = dma.hbm_to_vmem [thread:$0]  %s3, 512, %s253, [#allocation6], 128, 128, 8
        $region24: #{tpu_custom_call.1} parent=11 // pred_fallthru
          _
        // Predicated region
        $region25: #{tpu_custom_call.1} parent=11 // pred_check
          %p259 = pneg %p145
        $region26: #{tpu_custom_call.1} parent=11 // pred_check_branch
          %261 = sbr.rel (%p259) target = $region28
        $region27: #{tpu_custom_call.1} parent=11 // pred_region
          _
        $region28: #{tpu_custom_call.1} parent=11 // pred_fallthru
          _
        // Predicated region
        $region29: #{tpu_custom_call.1} parent=11 // pred_check
          %p262 = pneg %p166
        $region30: #{tpu_custom_call.1} parent=11 // pred_check_branch
          %264 = sbr.rel (%p262) target = $region32
        $region31: #{tpu_custom_call.1} parent=11 // pred_region
          %s266 = ssub.s32 512, 512
          %267 = vsyncadd [#allocation9], %s266
          %s268 = sshll.u32 [#allocation8], 4
          %s269 = int_to_ptr.vmem [resolvable:$true] %s268
          %274 = dma.hbm_to_vmem [thread:$0]  %s5, 512, %s269, [#allocation9], 128, 128, 8
        $region32: #{tpu_custom_call.1} parent=11 // pred_fallthru
          _
        // Predicated region
        $region33: #{tpu_custom_call.1} parent=11 // pred_check
          %p275 = pneg %p187
        $region34: #{tpu_custom_call.1} parent=11 // pred_check_branch
          %277 = sbr.rel (%p275) target = $region36
        $region35: #{tpu_custom_call.1} parent=11 // pred_region
          _
        $region36: #{tpu_custom_call.1} parent=11 // pred_fallthru
          _
      $region12: #{tpu_custom_call.1} parent=5 // pred_fallthru
        _
      %p278 = scmp.lt.s32.totalorder %s21, 4
      // Predicated region
      $region37: #{tpu_custom_call.1} parent=5 // pred_check
        %p279 = pneg %p278
      $region38: #{tpu_custom_call.1} parent=5 // pred_check_branch
        %281 = sbr.rel (%p279) target = $region40
      $region39: #{tpu_custom_call.1} parent=5 // pred_region
        // Predicated region
        $region41: #{tpu_custom_call.1} parent=39 // pred_check
          %p282 = pneg %p55
        $region42: #{tpu_custom_call.1} parent=39 // pred_check_branch
          %284 = sbr.rel (%p282) target = $region44
        $region43: #{tpu_custom_call.1} parent=39 // pred_region
          %s285 = sand.u32 %s45, 1
          %s286 = scalar_lea.sflag [#allocation3], %s285
          %s287 = sand.u32 %s45, 1
          %s288 = smul.addr %s287, 16
          %s289 = scalar_lea.vmem [#allocation2], %s288
          %s290 = smul.u32 2, %s29
          %s292 = ssub.s32 256, 256
          %293 = vsyncadd %s286, %s292
          %s294 = smul.addr %s28, 4
          %s295 = sadd.s32 %s290, %s294
          %s296 = smul.addr %s295, 128
          %s297 = scalar_lea.hbm %s0, %s296
          %s298 = sshll.u32 %s289, 4
          %s299 = int_to_ptr.vmem [resolvable:$true] %s298
          %304 = dma.hbm_to_vmem [thread:$0]  %s297, 256, %s299, %s286, 128, 128, 8
        $region44: #{tpu_custom_call.1} parent=39 // pred_fallthru
          _
      $region40: #{tpu_custom_call.1} parent=5 // pred_fallthru
        _
      %p305 = scmp.le.s32.totalorder 1, %s21
      %p306 = scmp.lt.s32.totalorder %s21, 5
      %p307 = pnand %p305, %p306
      %p308 = pneg %p307
      // Predicated region
      $region45: #{tpu_custom_call.1} parent=5 // pred_check
        _
      $region46: #{tpu_custom_call.1} parent=5 // pred_check_branch
        %310 = sbr.rel (%p307) target = $region48
      $region47: #{tpu_custom_call.1} parent=5 // pred_region
        %s311 = ssub.s32 %s21, 1
        %s312 = sand.u32 %s48, 1
        %s313 = scalar_lea.sflag [#allocation3], %s312
        %s314 = sand.u32 %s48, 1
        %s315 = smul.addr %s314, 16
        %s316 = scalar_lea.vmem [#allocation2], %s315
        // Predicated region
        $region49: #{tpu_custom_call.1} parent=47 // pred_check
          %p317 = pneg %p61
        $region50: #{tpu_custom_call.1} parent=47 // pred_check_branch
          %319 = sbr.rel (%p317) target = $region52
        $region51: #{tpu_custom_call.1} parent=47 // pred_region
          %320 = dma.done %s313, 256
        $region52: #{tpu_custom_call.1} parent=47 // pred_fallthru
          _
        // Predicated region
        $region53: #{tpu_custom_call.1} parent=47 // pred_check
          %p321 = pneg %p82
        $region54: #{tpu_custom_call.1} parent=47 // pred_check_branch
          %323 = sbr.rel (%p321) target = $region56
        $region55: #{tpu_custom_call.1} parent=47 // pred_region
          %324 = dma.done [#allocation6], 1536
        $region56: #{tpu_custom_call.1} parent=47 // pred_fallthru
          _
        // Predicated region
        $region57: #{tpu_custom_call.1} parent=47 // pred_check
          %p325 = pneg %p124
        $region58: #{tpu_custom_call.1} parent=47 // pred_check_branch
          %327 = sbr.rel (%p325) target = $region60
        $region59: #{tpu_custom_call.1} parent=47 // pred_region
          %328 = dma.done [#allocation6], 512
        $region60: #{tpu_custom_call.1} parent=47 // pred_fallthru
          _
        // Predicated region
        $region61: #{tpu_custom_call.1} parent=47 // pred_check
          %p329 = pneg %p166
        $region62: #{tpu_custom_call.1} parent=47 // pred_check_branch
          %331 = sbr.rel (%p329) target = $region64
        $region63: #{tpu_custom_call.1} parent=47 // pred_region
          %332 = dma.done [#allocation9], 512
        $region64: #{tpu_custom_call.1} parent=47 // pred_fallthru
          _
        %s333 = sand.u32 %s48, 1
        %s334 = scalar_lea.sflag [#allocation3], %s333
        %s335 = sand.u32 %s48, 1
        %s336 = smul.addr %s335, 16
        %s337 = scalar_lea.vmem [#allocation2], %s336
        %p338 = pneg %p61
        %p339 = pneg %p58
        %p340 = pneg %p82
        %p341 = pneg %p79
        %p342 = pneg %p103
        %p343 = pneg %p100
        %p344 = pneg %p124
        %p345 = pneg %p121
        %p346 = pneg %p145
        %p347 = pneg %p142
        %p348 = pneg %p166
        %p349 = pneg %p163
        %p350 = pneg %p187
        %p351 = pneg %p184
        %p352 = pneg %p215
        %p353 = pneg %p212
        %s354 = sand.u32 %s202, 1
        %s355 = scalar_lea.sflag [#allocation4], %s354
        %s356 = sand.u32 %s202, 1
        %s357 = smul.addr %s356, 16
        %s358 = scalar_lea.vmem [#allocation10], %s357
        %s359 = smul.u32 2, %s31
        %s360 = smul.u32 2, %s31
        %v361 = vld [vmem:[%s316] sm:$0xff]
        %v362 = vld [vmem:[%s316 + $0x8] sm:$0xff]
        %v363 = vld [vmem:[#allocation5] sm:$0xff]
        %v364 = vld [vmem:[#allocation5 + $0x8] sm:$0xff]
        %v365 = vld [vmem:[#allocation5 + $0x10] sm:$0xff]
        %v366 = vld [vmem:[#allocation5 + $0x18] sm:$0xff]
        %v367 = vld [vmem:[#allocation5 + $0x20] sm:$0xff]
        %v368 = vld [vmem:[#allocation5 + $0x28] sm:$0xff]
        %v369 = vld [vmem:[#allocation5 + $0x30] sm:$0xff]
        %v370 = vld [vmem:[#allocation5 + $0x38] sm:$0xff]
        %v371 = vld [vmem:[#allocation5 + $0x40] sm:$0xff]
        %v372 = vld [vmem:[#allocation5 + $0x48] sm:$0xff]
        %v373 = vld [vmem:[#allocation5 + $0x50] sm:$0xff]
        %v374 = vld [vmem:[#allocation5 + $0x58] sm:$0xff]
        %v375 = vld [vmem:[%s2] sm:$0x1]
        %v377 = vlaneseq
        %v378 = vshrl.u32 %v377, 7
        %v379 = vsub.s32 0, %v378
        %v380 = vrot.slane %v375, %v379
        %vm382 = vcmask 785408
        %v384 = vsel %vm382, %v361, 0
        %v387 = vsel %vm382, %v362, 0
        %389 = vmatprep.subr.mxu0 0.0
        %390 = vmatpush1.msra.mxu0 0.0
        %391 = vmatprep.subr.mxu0 0.0
        %392 = vmatpush1.msra.mxu0 0.0
        %393 = vmatprep.subr.mxu0 0.0
        %394 = vmatpush1.msra.mxu0 0.0
        %395 = vmatprep.subr.mxu0 0.0
        %396 = vmatpush1.msra.mxu0 0.0
        %397 = vmatprep.subr.mxu0 0.0
        %398 = vmatpush1.msra.mxu0 %v374
        %399 = vmatprep.subr.mxu0 0.0
        %400 = vmatpush1.msra.mxu0 %v373
        %401 = vmatprep.subr.mxu0 0.0
        %402 = vmatpush1.msra.mxu0 %v372
        %403 = vmatprep.subr.mxu0 0.0
        %404 = vmatpush1.msra.mxu0 %v371
        %405 = vmatprep.subr.mxu0 0.0
        %406 = vmatpush1.msra.mxu0 %v370
        %407 = vmatprep.subr.mxu0 0.0
        %408 = vmatpush1.msra.mxu0 %v369
        %409 = vmatprep.subr.mxu0 0.0
        %410 = vmatpush1.msra.mxu0 %v368
        %411 = vmatprep.subr.mxu0 0.0
        %412 = vmatpush1.msra.mxu0 %v367
        %413 = vmatprep.subr.mxu0 0.0
        %414 = vmatpush1.msra.mxu0 %v366
        %415 = vmatprep.subr.mxu0 0.0
        %416 = vmatpush1.msra.mxu0 %v365
        %417 = vmatprep.subr.mxu0 0.0
        %418 = vmatpush1.msra.mxu0 %v364
        %419 = vmatprep.subr.mxu0 0.0
        %420 = vmatpush1.msra.mxu0 %v363
        %421 = vmatprep.subr.mxu0 0.0
        %422 = vmatpush2.msra.mxu0 0.0
        %423 = vmatprep.subr.mxu0 0.0
        %424 = vmatpush2.msra.mxu0 0.0
        %425 = vmatprep.subr.mxu0 0.0
        %426 = vmatpush2.msra.mxu0 0.0
        %427 = vmatprep.subr.mxu0 0.0
        %428 = vmatpush2.msra.mxu0 0.0
        %429 = vmatprep.subr.mxu0 0.0
        %430 = vmatpush2.msra.mxu0 0.0
        %431 = vmatprep.subr.mxu0 0.0
        %432 = vmatpush2.msra.mxu0 0.0
        %433 = vmatprep.subr.mxu0 0.0
        %434 = vmatpush2.msra.mxu0 0.0
        %435 = vmatprep.subr.mxu0 0.0
        %436 = vmatpush2.msra.mxu0 0.0
        %437 = vmatprep.subr.mxu0 0.0
        %438 = vmatpush2.msra.mxu0 0.0
        %439 = vmatprep.subr.mxu0 0.0
        %440 = vmatpush2.msra.mxu0 0.0
        %441 = vmatprep.subr.mxu0 0.0
        %442 = vmatpush2.msra.mxu0 0.0
        %443 = vmatprep.subr.mxu0 0.0
        %444 = vmatpush2.msra.mxu0 0.0
        %445 = vmatprep.subr.mxu0 0.0
        %446 = vmatpush2.msra.mxu0 0.0
        %447 = vmatprep.subr.mxu0 0.0
        %448 = vmatpush2.msra.mxu0 0.0
        %449 = vmatprep.subr.mxu0 0.0
        %450 = vmatpush2.msra.mxu0 0.0
        %451 = vmatprep.subr.mxu0 0.0
        %452 = vmatpush2.msra.mxu0 0.0
        %453 = vmatprep.mubr.f32.mxu0 0.0
        %454 = vmatmul.mubr.f32.gmra.mxu0 %v384
        %v455 = vpop.f32.mrf.mxu0
        %v456 = vadd.f32 %v380, %v455
        %v457 = vpop.f32.mrf.mxu0
        %458 = vmatprep.mubr.f32.mxu0 0.0
        %459 = vmatmul.mubr.f32.gmra.mxu0 %v387
        %v460 = vpop.f32.mrf.mxu0
        %v461 = vadd.f32 %v380, %v460
        %v462 = vpop.f32.mrf.mxu0
        %463 = vdwg.mxu0
        %v464 = vmax.f32 %v456, 0.0
        %v465 = vmax.f32 %v461, 0.0
        %v466 = vlaneseq
        %v467 = vand.u32 %v466, 127
        %vm468 = vcmp.ge.s32.totalorder %v467, 0
        %vm469 = vcmp.lt.s32.totalorder %v467, 16
        %vm470 = vmand %vm468, %vm469
        %v471 = vsel %vm470, 1, 0
        %v472 = vcvt.s32.f32 %v471
        %v473 = vmul.f32 %v464, %v472
        %v474 = vmul.f32 %v465, %v472
        %476 = vrot.lane.b32.xlu0 %v464, 96
        %v477 = vpop.permute.xlu0 %476
        %vm478 = vcmask 261120
        %v480 = vsel %vm478, %v473, 0
        %v482 = vsel %vm478, %v477, 0
        %484 = vmatprep.subr.mxu0 0.0
        %485 = vmatpush1.xpose.msra.mxu0 0.0
        %486 = vmatprep.subr.mxu0 0.0
        %487 = vmatpush1.xpose.msra.mxu0 0.0
        %488 = vmatprep.subr.mxu0 0.0
        %489 = vmatpush1.xpose.msra.mxu0 0.0
        %490 = vmatprep.subr.mxu0 0.0
        %491 = vmatpush1.xpose.msra.mxu0 0.0
        %492 = vmatprep.subr.mxu0 0.0
        %493 = vmatpush1.xpose.msra.mxu0 0.0
        %494 = vmatprep.subr.mxu0 0.0
        %495 = vmatpush1.xpose.msra.mxu0 0.0
        %496 = vmatprep.subr.mxu0 0.0
        %497 = vmatpush1.xpose.msra.mxu0 0.0
        %498 = vmatprep.subr.mxu0 0.0
        %499 = vmatpush1.xpose.msra.mxu0 0.0
        %500 = vmatprep.subr.mxu0 0.0
        %501 = vmatpush1.xpose.msra.mxu0 0.0
        %502 = vmatprep.subr.mxu0 0.0
        %503 = vmatpush1.xpose.msra.mxu0 0.0
        %504 = vmatprep.subr.mxu0 0.0
        %505 = vmatpush1.xpose.msra.mxu0 0.0
        %506 = vmatprep.subr.mxu0 0.0
        %507 = vmatpush1.xpose.msra.mxu0 0.0
        %508 = vmatprep.subr.mxu0 0.0
        %509 = vmatpush1.xpose.msra.mxu0 0.0
        %510 = vmatprep.subr.mxu0 0.0
        %511 = vmatpush1.xpose.msra.mxu0 0.0
        %512 = vmatprep.subr.mxu0 0.0
        %513 = vmatpush1.xpose.msra.mxu0 0.0
        %514 = vmatprep.subr.mxu0 0.0
        %515 = vmatpush1.xpose.msra.mxu0 %v482
        %516 = vmatprep.subr.mxu0 0.0
        %517 = vmatpush2.xpose.msra.mxu0 0.0
        %518 = vmatprep.subr.mxu0 0.0
        %519 = vmatpush2.xpose.msra.mxu0 0.0
        %520 = vmatprep.subr.mxu0 0.0
        %521 = vmatpush2.xpose.msra.mxu0 0.0
        %522 = vmatprep.subr.mxu0 0.0
        %523 = vmatpush2.xpose.msra.mxu0 0.0
        %524 = vmatprep.subr.mxu0 0.0
        %525 = vmatpush2.xpose.msra.mxu0 0.0
        %526 = vmatprep.subr.mxu0 0.0
        %527 = vmatpush2.xpose.msra.mxu0 0.0
        %528 = vmatprep.subr.mxu0 0.0
        %529 = vmatpush2.xpose.msra.mxu0 0.0
        %530 = vmatprep.subr.mxu0 0.0
        %531 = vmatpush2.xpose.msra.mxu0 0.0
        %532 = vmatprep.subr.mxu0 0.0
        %533 = vmatpush2.xpose.msra.mxu0 0.0
        %534 = vmatprep.subr.mxu0 0.0
        %535 = vmatpush2.xpose.msra.mxu0 0.0
        %536 = vmatprep.subr.mxu0 0.0
        %537 = vmatpush2.xpose.msra.mxu0 0.0
        %538 = vmatprep.subr.mxu0 0.0
        %539 = vmatpush2.xpose.msra.mxu0 0.0
        %540 = vmatprep.subr.mxu0 0.0
        %541 = vmatpush2.xpose.msra.mxu0 0.0
        %542 = vmatprep.subr.mxu0 0.0
        %543 = vmatpush2.xpose.msra.mxu0 0.0
        %544 = vmatprep.subr.mxu0 0.0
        %545 = vmatpush2.xpose.msra.mxu0 0.0
        %546 = vmatprep.subr.mxu0 0.0
        %547 = vmatpush2.xpose.msra.mxu0 0.0
        %548 = vmatprep.mubr.f32.mxu0 0.0
        %549 = vmatmul.mubr.f32.gmra.mxu0 %v480
        %v550 = vpop.f32.mrf.mxu0
        %v551 = vadd.f32 0.0, %v550
        %v552 = vpop.f32.mrf.mxu0
        %553 = vdwg.mxu0
        %555 = vrot.lane.b32.xlu0 %v465, 96
        %v556 = vpop.permute.xlu0 %555
        %v558 = vsel %vm478, %v474, 0
        %v560 = vsel %vm478, %v556, 0
        %562 = vmatprep.subr.mxu0 0.0
        %563 = vmatpush1.xpose.msra.mxu0 0.0
        %564 = vmatprep.subr.mxu0 0.0
        %565 = vmatpush1.xpose.msra.mxu0 0.0
        %566 = vmatprep.subr.mxu0 0.0
        %567 = vmatpush1.xpose.msra.mxu0 0.0
        %568 = vmatprep.subr.mxu0 0.0
        %569 = vmatpush1.xpose.msra.mxu0 0.0
        %570 = vmatprep.subr.mxu0 0.0
        %571 = vmatpush1.xpose.msra.mxu0 0.0
        %572 = vmatprep.subr.mxu0 0.0
        %573 = vmatpush1.xpose.msra.mxu0 0.0
        %574 = vmatprep.subr.mxu0 0.0
        %575 = vmatpush1.xpose.msra.mxu0 0.0
        %576 = vmatprep.subr.mxu0 0.0
        %577 = vmatpush1.xpose.msra.mxu0 0.0
        %578 = vmatprep.subr.mxu0 0.0
        %579 = vmatpush1.xpose.msra.mxu0 0.0
        %580 = vmatprep.subr.mxu0 0.0
        %581 = vmatpush1.xpose.msra.mxu0 0.0
        %582 = vmatprep.subr.mxu0 0.0
        %583 = vmatpush1.xpose.msra.mxu0 0.0
        %584 = vmatprep.subr.mxu0 0.0
        %585 = vmatpush1.xpose.msra.mxu0 0.0
        %586 = vmatprep.subr.mxu0 0.0
        %587 = vmatpush1.xpose.msra.mxu0 0.0
        %588 = vmatprep.subr.mxu0 0.0
        %589 = vmatpush1.xpose.msra.mxu0 0.0
        %590 = vmatprep.subr.mxu0 0.0
        %591 = vmatpush1.xpose.msra.mxu0 0.0
        %592 = vmatprep.subr.mxu0 0.0
        %593 = vmatpush1.xpose.msra.mxu0 %v560
        %594 = vmatprep.subr.mxu0 0.0
        %595 = vmatpush2.xpose.msra.mxu0 0.0
        %596 = vmatprep.subr.mxu0 0.0
        %597 = vmatpush2.xpose.msra.mxu0 0.0
        %598 = vmatprep.subr.mxu0 0.0
        %599 = vmatpush2.xpose.msra.mxu0 0.0
        %600 = vmatprep.subr.mxu0 0.0
        %601 = vmatpush2.xpose.msra.mxu0 0.0
        %602 = vmatprep.subr.mxu0 0.0
        %603 = vmatpush2.xpose.msra.mxu0 0.0
        %604 = vmatprep.subr.mxu0 0.0
        %605 = vmatpush2.xpose.msra.mxu0 0.0
        %606 = vmatprep.subr.mxu0 0.0
        %607 = vmatpush2.xpose.msra.mxu0 0.0
        %608 = vmatprep.subr.mxu0 0.0
        %609 = vmatpush2.xpose.msra.mxu0 0.0
        %610 = vmatprep.subr.mxu0 0.0
        %611 = vmatpush2.xpose.msra.mxu0 0.0
        %612 = vmatprep.subr.mxu0 0.0
        %613 = vmatpush2.xpose.msra.mxu0 0.0
        %614 = vmatprep.subr.mxu0 0.0
        %615 = vmatpush2.xpose.msra.mxu0 0.0
        %616 = vmatprep.subr.mxu0 0.0
        %617 = vmatpush2.xpose.msra.mxu0 0.0
        %618 = vmatprep.subr.mxu0 0.0
        %619 = vmatpush2.xpose.msra.mxu0 0.0
        %620 = vmatprep.subr.mxu0 0.0
        %621 = vmatpush2.xpose.msra.mxu0 0.0
        %622 = vmatprep.subr.mxu0 0.0
        %623 = vmatpush2.xpose.msra.mxu0 0.0
        %624 = vmatprep.subr.mxu0 0.0
        %625 = vmatpush2.xpose.msra.mxu0 0.0
        %626 = vmatprep.mubr.f32.mxu0 0.0
        %627 = vmatmul.mubr.f32.gmra.mxu0 %v558
        %v628 = vpop.f32.mrf.mxu0
        %v629 = vadd.f32 0.0, %v628
        %v630 = vpop.f32.mrf.mxu0
        %631 = vdwg.mxu0
        %v632 = vmul.f32 %v551, 0.25
        %v633 = vmul.f32 %v629, 0.25
        %vm634 = vcmask 64512
        %v635 = vsel %vm634, %v632, -inf
        %636 = vmax.xlane.f32.xlu0 %v635
        %v637 = vpop.xlane.xlu0 %636
        %v638 = vsel %vm634, %v633, -inf
        %639 = vmax.xlane.f32.xlu0 %v638
        %v640 = vpop.xlane.xlu0 %639
        %v641 = vsub.f32 %v632, %v637
        %v642 = vsub.f32 %v633, %v640
        %v643 = vmul.f32 %v641, 1.442695
        %v644 = vpow.pop %v643
        %v645 = vmul.f32 %v642, 1.442695
        %v646 = vpow.pop %v645
        %v647 = vsel %vm634, %v644, 0.0
        %648 = vadd.xlane.f32.xlu0 %v647
        %v649 = vpop.xlane.xlu0 %648
        %v650 = vsel %vm634, %v646, 0.0
        %651 = vadd.xlane.f32.xlu0 %v650
        %v652 = vpop.xlane.xlu0 %651
        %v653 = vrcp.pop %v649
        %v654 = vrcp.pop %v652
        %v655 = vmul.f32 %v644, %v653
        %v656 = vmul.f32 %v646, %v654
        %657 = vrot.lane.b32.xlu0 %v464, 64
        %v658 = vpop.permute.xlu0 %657
        %v661 = vsel %vm634, %v655, 0
        %663 = vmatprep.subr.mxu0 0.0
        %664 = vmatpush1.msra.mxu0 0.0
        %665 = vmatprep.subr.mxu0 0.0
        %666 = vmatpush1.msra.mxu0 0.0
        %667 = vmatprep.subr.mxu0 0.0
        %668 = vmatpush1.msra.mxu0 0.0
        %669 = vmatprep.subr.mxu0 0.0
        %670 = vmatpush1.msra.mxu0 0.0
        %671 = vmatprep.subr.mxu0 0.0
        %672 = vmatpush1.msra.mxu0 0.0
        %673 = vmatprep.subr.mxu0 0.0
        %674 = vmatpush1.msra.mxu0 0.0
        %675 = vmatprep.subr.mxu0 0.0
        %676 = vmatpush1.msra.mxu0 0.0
        %677 = vmatprep.subr.mxu0 0.0
        %678 = vmatpush1.msra.mxu0 0.0
        %679 = vmatprep.subr.mxu0 0.0
        %680 = vmatpush1.msra.mxu0 0.0
        %681 = vmatprep.subr.mxu0 0.0
        %682 = vmatpush1.msra.mxu0 0.0
        %683 = vmatprep.subr.mxu0 0.0
        %684 = vmatpush1.msra.mxu0 0.0
        %685 = vmatprep.subr.mxu0 0.0
        %686 = vmatpush1.msra.mxu0 0.0
        %687 = vmatprep.subr.mxu0 0.0
        %688 = vmatpush1.msra.mxu0 0.0
        %689 = vmatprep.subr.mxu0 0.0
        %690 = vmatpush1.msra.mxu0 0.0
        %691 = vmatprep.subr.mxu0 0.0
        %692 = vmatpush1.msra.mxu0 0.0
        %693 = vmatprep.subr.mxu0 0.0
        %694 = vmatpush1.msra.mxu0 %v658
        %695 = vmatprep.subr.mxu0 0.0
        %696 = vmatpush2.msra.mxu0 0.0
        %697 = vmatprep.subr.mxu0 0.0
        %698 = vmatpush2.msra.mxu0 0.0
        %699 = vmatprep.subr.mxu0 0.0
        %700 = vmatpush2.msra.mxu0 0.0
        %701 = vmatprep.subr.mxu0 0.0
        %702 = vmatpush2.msra.mxu0 0.0
        %703 = vmatprep.subr.mxu0 0.0
        %704 = vmatpush2.msra.mxu0 0.0
        %705 = vmatprep.subr.mxu0 0.0
        %706 = vmatpush2.msra.mxu0 0.0
        %707 = vmatprep.subr.mxu0 0.0
        %708 = vmatpush2.msra.mxu0 0.0
        %709 = vmatprep.subr.mxu0 0.0
        %710 = vmatpush2.msra.mxu0 0.0
        %711 = vmatprep.subr.mxu0 0.0
        %712 = vmatpush2.msra.mxu0 0.0
        %713 = vmatprep.subr.mxu0 0.0
        %714 = vmatpush2.msra.mxu0 0.0
        %715 = vmatprep.subr.mxu0 0.0
        %716 = vmatpush2.msra.mxu0 0.0
        %717 = vmatprep.subr.mxu0 0.0
        %718 = vmatpush2.msra.mxu0 0.0
        %719 = vmatprep.subr.mxu0 0.0
        %720 = vmatpush2.msra.mxu0 0.0
        %721 = vmatprep.subr.mxu0 0.0
        %722 = vmatpush2.msra.mxu0 0.0
        %723 = vmatprep.subr.mxu0 0.0
        %724 = vmatpush2.msra.mxu0 0.0
        %725 = vmatprep.subr.mxu0 0.0
        %726 = vmatpush2.msra.mxu0 0.0
        %727 = vmatprep.mubr.f32.mxu0 0.0
        %728 = vmatmul.mubr.f32.gmra.mxu0 %v661
        %v729 = vpop.f32.mrf.mxu0
        %v730 = vadd.f32 0.0, %v729
        %v731 = vpop.f32.mrf.mxu0
        %732 = vdwg.mxu0
        %733 = vrot.lane.b32.xlu0 %v465, 64
        %v734 = vpop.permute.xlu0 %733
        %v737 = vsel %vm634, %v656, 0
        %739 = vmatprep.subr.mxu0 0.0
        %740 = vmatpush1.msra.mxu0 0.0
        %741 = vmatprep.subr.mxu0 0.0
        %742 = vmatpush1.msra.mxu0 0.0
        %743 = vmatprep.subr.mxu0 0.0
        %744 = vmatpush1.msra.mxu0 0.0
        %745 = vmatprep.subr.mxu0 0.0
        %746 = vmatpush1.msra.mxu0 0.0
        %747 = vmatprep.subr.mxu0 0.0
        %748 = vmatpush1.msra.mxu0 0.0
        %749 = vmatprep.subr.mxu0 0.0
        %750 = vmatpush1.msra.mxu0 0.0
        %751 = vmatprep.subr.mxu0 0.0
        %752 = vmatpush1.msra.mxu0 0.0
        %753 = vmatprep.subr.mxu0 0.0
        %754 = vmatpush1.msra.mxu0 0.0
        %755 = vmatprep.subr.mxu0 0.0
        %756 = vmatpush1.msra.mxu0 0.0
        %757 = vmatprep.subr.mxu0 0.0
        %758 = vmatpush1.msra.mxu0 0.0
        %759 = vmatprep.subr.mxu0 0.0
        %760 = vmatpush1.msra.mxu0 0.0
        %761 = vmatprep.subr.mxu0 0.0
        %762 = vmatpush1.msra.mxu0 0.0
        %763 = vmatprep.subr.mxu0 0.0
        %764 = vmatpush1.msra.mxu0 0.0
        %765 = vmatprep.subr.mxu0 0.0
        %766 = vmatpush1.msra.mxu0 0.0
        %767 = vmatprep.subr.mxu0 0.0
        %768 = vmatpush1.msra.mxu0 0.0
        %769 = vmatprep.subr.mxu0 0.0
        %770 = vmatpush1.msra.mxu0 %v734
        %771 = vmatprep.subr.mxu0 0.0
        %772 = vmatpush2.msra.mxu0 0.0
        %773 = vmatprep.subr.mxu0 0.0
        %774 = vmatpush2.msra.mxu0 0.0
        %775 = vmatprep.subr.mxu0 0.0
        %776 = vmatpush2.msra.mxu0 0.0
        %777 = vmatprep.subr.mxu0 0.0
        %778 = vmatpush2.msra.mxu0 0.0
        %779 = vmatprep.subr.mxu0 0.0
        %780 = vmatpush2.msra.mxu0 0.0
        %781 = vmatprep.subr.mxu0 0.0
        %782 = vmatpush2.msra.mxu0 0.0
        %783 = vmatprep.subr.mxu0 0.0
        %784 = vmatpush2.msra.mxu0 0.0
        %785 = vmatprep.subr.mxu0 0.0
        %786 = vmatpush2.msra.mxu0 0.0
        %787 = vmatprep.subr.mxu0 0.0
        %788 = vmatpush2.msra.mxu0 0.0
        %789 = vmatprep.subr.mxu0 0.0
        %790 = vmatpush2.msra.mxu0 0.0
        %791 = vmatprep.subr.mxu0 0.0
        %792 = vmatpush2.msra.mxu0 0.0
        %793 = vmatprep.subr.mxu0 0.0
        %794 = vmatpush2.msra.mxu0 0.0
        %795 = vmatprep.subr.mxu0 0.0
        %796 = vmatpush2.msra.mxu0 0.0
        %797 = vmatprep.subr.mxu0 0.0
        %798 = vmatpush2.msra.mxu0 0.0
        %799 = vmatprep.subr.mxu0 0.0
        %800 = vmatpush2.msra.mxu0 0.0
        %801 = vmatprep.subr.mxu0 0.0
        %802 = vmatpush2.msra.mxu0 0.0
        %803 = vmatprep.mubr.f32.mxu0 0.0
        %804 = vmatmul.mubr.f32.gmra.mxu0 %v737
        %v805 = vpop.f32.mrf.mxu0
        %v806 = vadd.f32 0.0, %v805
        %v807 = vpop.f32.mrf.mxu0
        %808 = vdwg.mxu0
        %v809 = vmul.f32 %v730, %v472
        %v810 = vmul.f32 %v806, %v472
        %v811 = vadd.f32 %v809, 0.0
        %v812 = vadd.f32 %v810, 0.0
        %vm813 = vcmp.ge.s32.totalorder %v467, 16
        %vm814 = vcmp.lt.s32.totalorder %v467, 32
        %vm815 = vmand %vm813, %vm814
        %v816 = vsel %vm815, 1, 0
        %v817 = vcvt.s32.f32 %v816
        %v818 = vmul.f32 %v464, %v817
        %v819 = vmul.f32 %v465, %v817
        %v821 = vsel %vm478, %v818, 0
        %823 = vmatprep.subr.mxu0 0.0
        %824 = vmatpush1.xpose.msra.mxu0 0.0
        %825 = vmatprep.subr.mxu0 0.0
        %826 = vmatpush1.xpose.msra.mxu0 0.0
        %827 = vmatprep.subr.mxu0 0.0
        %828 = vmatpush1.xpose.msra.mxu0 0.0
        %829 = vmatprep.subr.mxu0 0.0
        %830 = vmatpush1.xpose.msra.mxu0 0.0
        %831 = vmatprep.subr.mxu0 0.0
        %832 = vmatpush1.xpose.msra.mxu0 0.0
        %833 = vmatprep.subr.mxu0 0.0
        %834 = vmatpush1.xpose.msra.mxu0 0.0
        %835 = vmatprep.subr.mxu0 0.0
        %836 = vmatpush1.xpose.msra.mxu0 0.0
        %837 = vmatprep.subr.mxu0 0.0
        %838 = vmatpush1.xpose.msra.mxu0 0.0
        %839 = vmatprep.subr.mxu0 0.0
        %840 = vmatpush1.xpose.msra.mxu0 0.0
        %841 = vmatprep.subr.mxu0 0.0
        %842 = vmatpush1.xpose.msra.mxu0 0.0
        %843 = vmatprep.subr.mxu0 0.0
        %844 = vmatpush1.xpose.msra.mxu0 0.0
        %845 = vmatprep.subr.mxu0 0.0
        %846 = vmatpush1.xpose.msra.mxu0 0.0
        %847 = vmatprep.subr.mxu0 0.0
        %848 = vmatpush1.xpose.msra.mxu0 0.0
        %849 = vmatprep.subr.mxu0 0.0
        %850 = vmatpush1.xpose.msra.mxu0 0.0
        %851 = vmatprep.subr.mxu0 0.0
        %852 = vmatpush1.xpose.msra.mxu0 0.0
        %853 = vmatprep.subr.mxu0 0.0
        %854 = vmatpush1.xpose.msra.mxu0 %v482
        %855 = vmatprep.subr.mxu0 0.0
        %856 = vmatpush2.xpose.msra.mxu0 0.0
        %857 = vmatprep.subr.mxu0 0.0
        %858 = vmatpush2.xpose.msra.mxu0 0.0
        %859 = vmatprep.subr.mxu0 0.0
        %860 = vmatpush2.xpose.msra.mxu0 0.0
        %861 = vmatprep.subr.mxu0 0.0
        %862 = vmatpush2.xpose.msra.mxu0 0.0
        %863 = vmatprep.subr.mxu0 0.0
        %864 = vmatpush2.xpose.msra.mxu0 0.0
        %865 = vmatprep.subr.mxu0 0.0
        %866 = vmatpush2.xpose.msra.mxu0 0.0
        %867 = vmatprep.subr.mxu0 0.0
        %868 = vmatpush2.xpose.msra.mxu0 0.0
        %869 = vmatprep.subr.mxu0 0.0
        %870 = vmatpush2.xpose.msra.mxu0 0.0
        %871 = vmatprep.subr.mxu0 0.0
        %872 = vmatpush2.xpose.msra.mxu0 0.0
        %873 = vmatprep.subr.mxu0 0.0
        %874 = vmatpush2.xpose.msra.mxu0 0.0
        %875 = vmatprep.subr.mxu0 0.0
        %876 = vmatpush2.xpose.msra.mxu0 0.0
        %877 = vmatprep.subr.mxu0 0.0
        %878 = vmatpush2.xpose.msra.mxu0 0.0
        %879 = vmatprep.subr.mxu0 0.0
        %880 = vmatpush2.xpose.msra.mxu0 0.0
        %881 = vmatprep.subr.mxu0 0.0
        %882 = vmatpush2.xpose.msra.mxu0 0.0
        %883 = vmatprep.subr.mxu0 0.0
        %884 = vmatpush2.xpose.msra.mxu0 0.0
        %885 = vmatprep.subr.mxu0 0.0
        %886 = vmatpush2.xpose.msra.mxu0 0.0
        %887 = vmatprep.mubr.f32.mxu0 0.0
        %888 = vmatmul.mubr.f32.gmra.mxu0 %v821
        %v889 = vpop.f32.mrf.mxu0
        %v890 = vadd.f32 0.0, %v889
        %v891 = vpop.f32.mrf.mxu0
        %892 = vdwg.mxu0
        %v894 = vsel %vm478, %v819, 0
        %896 = vmatprep.subr.mxu0 0.0
        %897 = vmatpush1.xpose.msra.mxu0 0.0
        %898 = vmatprep.subr.mxu0 0.0
        %899 = vmatpush1.xpose.msra.mxu0 0.0
        %900 = vmatprep.subr.mxu0 0.0
        %901 = vmatpush1.xpose.msra.mxu0 0.0
        %902 = vmatprep.subr.mxu0 0.0
        %903 = vmatpush1.xpose.msra.mxu0 0.0
        %904 = vmatprep.subr.mxu0 0.0
        %905 = vmatpush1.xpose.msra.mxu0 0.0
        %906 = vmatprep.subr.mxu0 0.0
        %907 = vmatpush1.xpose.msra.mxu0 0.0
        %908 = vmatprep.subr.mxu0 0.0
        %909 = vmatpush1.xpose.msra.mxu0 0.0
        %910 = vmatprep.subr.mxu0 0.0
        %911 = vmatpush1.xpose.msra.mxu0 0.0
        %912 = vmatprep.subr.mxu0 0.0
        %913 = vmatpush1.xpose.msra.mxu0 0.0
        %914 = vmatprep.subr.mxu0 0.0
        %915 = vmatpush1.xpose.msra.mxu0 0.0
        %916 = vmatprep.subr.mxu0 0.0
        %917 = vmatpush1.xpose.msra.mxu0 0.0
        %918 = vmatprep.subr.mxu0 0.0
        %919 = vmatpush1.xpose.msra.mxu0 0.0
        %920 = vmatprep.subr.mxu0 0.0
        %921 = vmatpush1.xpose.msra.mxu0 0.0
        %922 = vmatprep.subr.mxu0 0.0
        %923 = vmatpush1.xpose.msra.mxu0 0.0
        %924 = vmatprep.subr.mxu0 0.0
        %925 = vmatpush1.xpose.msra.mxu0 0.0
        %926 = vmatprep.subr.mxu0 0.0
        %927 = vmatpush1.xpose.msra.mxu0 %v560
        %928 = vmatprep.subr.mxu0 0.0
        %929 = vmatpush2.xpose.msra.mxu0 0.0
        %930 = vmatprep.subr.mxu0 0.0
        %931 = vmatpush2.xpose.msra.mxu0 0.0
        %932 = vmatprep.subr.mxu0 0.0
        %933 = vmatpush2.xpose.msra.mxu0 0.0
        %934 = vmatprep.subr.mxu0 0.0
        %935 = vmatpush2.xpose.msra.mxu0 0.0
        %936 = vmatprep.subr.mxu0 0.0
        %937 = vmatpush2.xpose.msra.mxu0 0.0
        %938 = vmatprep.subr.mxu0 0.0
        %939 = vmatpush2.xpose.msra.mxu0 0.0
        %940 = vmatprep.subr.mxu0 0.0
        %941 = vmatpush2.xpose.msra.mxu0 0.0
        %942 = vmatprep.subr.mxu0 0.0
        %943 = vmatpush2.xpose.msra.mxu0 0.0
        %944 = vmatprep.subr.mxu0 0.0
        %945 = vmatpush2.xpose.msra.mxu0 0.0
        %946 = vmatprep.subr.mxu0 0.0
        %947 = vmatpush2.xpose.msra.mxu0 0.0
        %948 = vmatprep.subr.mxu0 0.0
        %949 = vmatpush2.xpose.msra.mxu0 0.0
        %950 = vmatprep.subr.mxu0 0.0
        %951 = vmatpush2.xpose.msra.mxu0 0.0
        %952 = vmatprep.subr.mxu0 0.0
        %953 = vmatpush2.xpose.msra.mxu0 0.0
        %954 = vmatprep.subr.mxu0 0.0
        %955 = vmatpush2.xpose.msra.mxu0 0.0
        %956 = vmatprep.subr.mxu0 0.0
        %957 = vmatpush2.xpose.msra.mxu0 0.0
        %958 = vmatprep.subr.mxu0 0.0
        %959 = vmatpush2.xpose.msra.mxu0 0.0
        %960 = vmatprep.mubr.f32.mxu0 0.0
        %961 = vmatmul.mubr.f32.gmra.mxu0 %v894
        %v962 = vpop.f32.mrf.mxu0
        %v963 = vadd.f32 0.0, %v962
        %v964 = vpop.f32.mrf.mxu0
        %965 = vdwg.mxu0
        %v966 = vmul.f32 %v890, 0.25
        %v967 = vmul.f32 %v963, 0.25
        %v968 = vsel %vm634, %v966, -inf
        %969 = vmax.xlane.f32.xlu0 %v968
        %v970 = vpop.xlane.xlu0 %969
        %v971 = vsel %vm634, %v967, -inf
        %972 = vmax.xlane.f32.xlu0 %v971
        %v973 = vpop.xlane.xlu0 %972
        %v974 = vsub.f32 %v966, %v970
        %v975 = vsub.f32 %v967, %v973
        %v976 = vmul.f32 %v974, 1.442695
        %v977 = vpow.pop %v976
        %v978 = vmul.f32 %v975, 1.442695
        %v979 = vpow.pop %v978
        %v980 = vsel %vm634, %v977, 0.0
        %981 = vadd.xlane.f32.xlu0 %v980
        %v982 = vpop.xlane.xlu0 %981
        %v983 = vsel %vm634, %v979, 0.0
        %984 = vadd.xlane.f32.xlu0 %v983
        %v985 = vpop.xlane.xlu0 %984
        %v986 = vrcp.pop %v982
        %v987 = vrcp.pop %v985
        %v988 = vmul.f32 %v977, %v986
        %v989 = vmul.f32 %v979, %v987
        %v991 = vsel %vm634, %v988, 0
        %993 = vmatprep.subr.mxu0 0.0
        %994 = vmatpush1.msra.mxu0 0.0
        %995 = vmatprep.subr.mxu0 0.0
        %996 = vmatpush1.msra.mxu0 0.0
        %997 = vmatprep.subr.mxu0 0.0
        %998 = vmatpush1.msra.mxu0 0.0
        %999 = vmatprep.subr.mxu0 0.0
        %1000 = vmatpush1.msra.mxu0 0.0
        %1001 = vmatprep.subr.mxu0 0.0
        %1002 = vmatpush1.msra.mxu0 0.0
        %1003 = vmatprep.subr.mxu0 0.0
        %1004 = vmatpush1.msra.mxu0 0.0
        %1005 = vmatprep.subr.mxu0 0.0
        %1006 = vmatpush1.msra.mxu0 0.0
        %1007 = vmatprep.subr.mxu0 0.0
        %1008 = vmatpush1.msra.mxu0 0.0
        %1009 = vmatprep.subr.mxu0 0.0
        %1010 = vmatpush1.msra.mxu0 0.0
        %1011 = vmatprep.subr.mxu0 0.0
        %1012 = vmatpush1.msra.mxu0 0.0
        %1013 = vmatprep.subr.mxu0 0.0
        %1014 = vmatpush1.msra.mxu0 0.0
        %1015 = vmatprep.subr.mxu0 0.0
        %1016 = vmatpush1.msra.mxu0 0.0
        %1017 = vmatprep.subr.mxu0 0.0
        %1018 = vmatpush1.msra.mxu0 0.0
        %1019 = vmatprep.subr.mxu0 0.0
        %1020 = vmatpush1.msra.mxu0 0.0
        %1021 = vmatprep.subr.mxu0 0.0
        %1022 = vmatpush1.msra.mxu0 0.0
        %1023 = vmatprep.subr.mxu0 0.0
        %1024 = vmatpush1.msra.mxu0 %v658
        %1025 = vmatprep.subr.mxu0 0.0
        %1026 = vmatpush2.msra.mxu0 0.0
        %1027 = vmatprep.subr.mxu0 0.0
        %1028 = vmatpush2.msra.mxu0 0.0
        %1029 = vmatprep.subr.mxu0 0.0
        %1030 = vmatpush2.msra.mxu0 0.0
        %1031 = vmatprep.subr.mxu0 0.0
        %1032 = vmatpush2.msra.mxu0 0.0
        %1033 = vmatprep.subr.mxu0 0.0
        %1034 = vmatpush2.msra.mxu0 0.0
        %1035 = vmatprep.subr.mxu0 0.0
        %1036 = vmatpush2.msra.mxu0 0.0
        %1037 = vmatprep.subr.mxu0 0.0
        %1038 = vmatpush2.msra.mxu0 0.0
        %1039 = vmatprep.subr.mxu0 0.0
        %1040 = vmatpush2.msra.mxu0 0.0
        %1041 = vmatprep.subr.mxu0 0.0
        %1042 = vmatpush2.msra.mxu0 0.0
        %1043 = vmatprep.subr.mxu0 0.0
        %1044 = vmatpush2.msra.mxu0 0.0
        %1045 = vmatprep.subr.mxu0 0.0
        %1046 = vmatpush2.msra.mxu0 0.0
        %1047 = vmatprep.subr.mxu0 0.0
        %1048 = vmatpush2.msra.mxu0 0.0
        %1049 = vmatprep.subr.mxu0 0.0
        %1050 = vmatpush2.msra.mxu0 0.0
        %1051 = vmatprep.subr.mxu0 0.0
        %1052 = vmatpush2.msra.mxu0 0.0
        %1053 = vmatprep.subr.mxu0 0.0
        %1054 = vmatpush2.msra.mxu0 0.0
        %1055 = vmatprep.subr.mxu0 0.0
        %1056 = vmatpush2.msra.mxu0 0.0
        %1057 = vmatprep.mubr.f32.mxu0 0.0
        %1058 = vmatmul.mubr.f32.gmra.mxu0 %v991
        %v1059 = vpop.f32.mrf.mxu0
        %v1060 = vadd.f32 0.0, %v1059
        %v1061 = vpop.f32.mrf.mxu0
        %1062 = vdwg.mxu0
        %v1064 = vsel %vm634, %v989, 0
        %1066 = vmatprep.subr.mxu0 0.0
        %1067 = vmatpush1.msra.mxu0 0.0
        %1068 = vmatprep.subr.mxu0 0.0
        %1069 = vmatpush1.msra.mxu0 0.0
        %1070 = vmatprep.subr.mxu0 0.0
        %1071 = vmatpush1.msra.mxu0 0.0
        %1072 = vmatprep.subr.mxu0 0.0
        %1073 = vmatpush1.msra.mxu0 0.0
        %1074 = vmatprep.subr.mxu0 0.0
        %1075 = vmatpush1.msra.mxu0 0.0
        %1076 = vmatprep.subr.mxu0 0.0
        %1077 = vmatpush1.msra.mxu0 0.0
        %1078 = vmatprep.subr.mxu0 0.0
        %1079 = vmatpush1.msra.mxu0 0.0
        %1080 = vmatprep.subr.mxu0 0.0
        %1081 = vmatpush1.msra.mxu0 0.0
        %1082 = vmatprep.subr.mxu0 0.0
        %1083 = vmatpush1.msra.mxu0 0.0
        %1084 = vmatprep.subr.mxu0 0.0
        %1085 = vmatpush1.msra.mxu0 0.0
        %1086 = vmatprep.subr.mxu0 0.0
        %1087 = vmatpush1.msra.mxu0 0.0
        %1088 = vmatprep.subr.mxu0 0.0
        %1089 = vmatpush1.msra.mxu0 0.0
        %1090 = vmatprep.subr.mxu0 0.0
        %1091 = vmatpush1.msra.mxu0 0.0
        %1092 = vmatprep.subr.mxu0 0.0
        %1093 = vmatpush1.msra.mxu0 0.0
        %1094 = vmatprep.subr.mxu0 0.0
        %1095 = vmatpush1.msra.mxu0 0.0
        %1096 = vmatprep.subr.mxu0 0.0
        %1097 = vmatpush1.msra.mxu0 %v734
        %1098 = vmatprep.subr.mxu0 0.0
        %1099 = vmatpush2.msra.mxu0 0.0
        %1100 = vmatprep.subr.mxu0 0.0
        %1101 = vmatpush2.msra.mxu0 0.0
        %1102 = vmatprep.subr.mxu0 0.0
        %1103 = vmatpush2.msra.mxu0 0.0
        %1104 = vmatprep.subr.mxu0 0.0
        %1105 = vmatpush2.msra.mxu0 0.0
        %1106 = vmatprep.subr.mxu0 0.0
        %1107 = vmatpush2.msra.mxu0 0.0
        %1108 = vmatprep.subr.mxu0 0.0
        %1109 = vmatpush2.msra.mxu0 0.0
        %1110 = vmatprep.subr.mxu0 0.0
        %1111 = vmatpush2.msra.mxu0 0.0
        %1112 = vmatprep.subr.mxu0 0.0
        %1113 = vmatpush2.msra.mxu0 0.0
        %1114 = vmatprep.subr.mxu0 0.0
        %1115 = vmatpush2.msra.mxu0 0.0
        %1116 = vmatprep.subr.mxu0 0.0
        %1117 = vmatpush2.msra.mxu0 0.0
        %1118 = vmatprep.subr.mxu0 0.0
        %1119 = vmatpush2.msra.mxu0 0.0
        %1120 = vmatprep.subr.mxu0 0.0
        %1121 = vmatpush2.msra.mxu0 0.0
        %1122 = vmatprep.subr.mxu0 0.0
        %1123 = vmatpush2.msra.mxu0 0.0
        %1124 = vmatprep.subr.mxu0 0.0
        %1125 = vmatpush2.msra.mxu0 0.0
        %1126 = vmatprep.subr.mxu0 0.0
        %1127 = vmatpush2.msra.mxu0 0.0
        %1128 = vmatprep.subr.mxu0 0.0
        %1129 = vmatpush2.msra.mxu0 0.0
        %1130 = vmatprep.mubr.f32.mxu0 0.0
        %1131 = vmatmul.mubr.f32.gmra.mxu0 %v1064
        %v1132 = vpop.f32.mrf.mxu0
        %v1133 = vadd.f32 0.0, %v1132
        %v1134 = vpop.f32.mrf.mxu0
        %1135 = vdwg.mxu0
        %v1136 = vmul.f32 %v1060, %v817
        %v1137 = vmul.f32 %v1133, %v817
        %v1138 = vadd.f32 %v811, %v1136
        %v1139 = vadd.f32 %v812, %v1137
        %v1140 = vld [vmem:[#allocation7] sm:$0xff]
        %v1141 = vld [vmem:[#allocation7 + $0x8] sm:$0xff]
        %v1142 = vld [vmem:[#allocation7 + $0x10] sm:$0xff]
        %v1143 = vld [vmem:[#allocation7 + $0x18] sm:$0xff]
        %v1144 = vld [vmem:[%s4] sm:$0x1]
        %v1146 = vlaneseq
        %v1147 = vshrl.u32 %v1146, 7
        %v1148 = vsub.s32 0, %v1147
        %v1149 = vrot.slane %v1144, %v1148
        %v1152 = vsel %vm478, %v1138, 0
        %v1155 = vsel %vm478, %v1139, 0
        %1157 = vmatprep.subr.mxu0 0.0
        %1158 = vmatpush1.msra.mxu0 0.0
        %1159 = vmatprep.subr.mxu0 0.0
        %1160 = vmatpush1.msra.mxu0 0.0
        %1161 = vmatprep.subr.mxu0 0.0
        %1162 = vmatpush1.msra.mxu0 0.0
        %1163 = vmatprep.subr.mxu0 0.0
        %1164 = vmatpush1.msra.mxu0 0.0
        %1165 = vmatprep.subr.mxu0 0.0
        %1166 = vmatpush1.msra.mxu0 0.0
        %1167 = vmatprep.subr.mxu0 0.0
        %1168 = vmatpush1.msra.mxu0 0.0
        %1169 = vmatprep.subr.mxu0 0.0
        %1170 = vmatpush1.msra.mxu0 0.0
        %1171 = vmatprep.subr.mxu0 0.0
        %1172 = vmatpush1.msra.mxu0 0.0
        %1173 = vmatprep.subr.mxu0 0.0
        %1174 = vmatpush1.msra.mxu0 0.0
        %1175 = vmatprep.subr.mxu0 0.0
        %1176 = vmatpush1.msra.mxu0 0.0
        %1177 = vmatprep.subr.mxu0 0.0
        %1178 = vmatpush1.msra.mxu0 0.0
        %1179 = vmatprep.subr.mxu0 0.0
        %1180 = vmatpush1.msra.mxu0 0.0
        %1181 = vmatprep.subr.mxu0 0.0
        %1182 = vmatpush1.msra.mxu0 %v1143
        %1183 = vmatprep.subr.mxu0 0.0
        %1184 = vmatpush1.msra.mxu0 %v1142
        %1185 = vmatprep.subr.mxu0 0.0
        %1186 = vmatpush1.msra.mxu0 %v1141
        %1187 = vmatprep.subr.mxu0 0.0
        %1188 = vmatpush1.msra.mxu0 %v1140
        %1189 = vmatprep.subr.mxu0 0.0
        %1190 = vmatpush2.msra.mxu0 0.0
        %1191 = vmatprep.subr.mxu0 0.0
        %1192 = vmatpush2.msra.mxu0 0.0
        %1193 = vmatprep.subr.mxu0 0.0
        %1194 = vmatpush2.msra.mxu0 0.0
        %1195 = vmatprep.subr.mxu0 0.0
        %1196 = vmatpush2.msra.mxu0 0.0
        %1197 = vmatprep.subr.mxu0 0.0
        %1198 = vmatpush2.msra.mxu0 0.0
        %1199 = vmatprep.subr.mxu0 0.0
        %1200 = vmatpush2.msra.mxu0 0.0
        %1201 = vmatprep.subr.mxu0 0.0
        %1202 = vmatpush2.msra.mxu0 0.0
        %1203 = vmatprep.subr.mxu0 0.0
        %1204 = vmatpush2.msra.mxu0 0.0
        %1205 = vmatprep.subr.mxu0 0.0
        %1206 = vmatpush2.msra.mxu0 0.0
        %1207 = vmatprep.subr.mxu0 0.0
        %1208 = vmatpush2.msra.mxu0 0.0
        %1209 = vmatprep.subr.mxu0 0.0
        %1210 = vmatpush2.msra.mxu0 0.0
        %1211 = vmatprep.subr.mxu0 0.0
        %1212 = vmatpush2.msra.mxu0 0.0
        %1213 = vmatprep.subr.mxu0 0.0
        %1214 = vmatpush2.msra.mxu0 0.0
        %1215 = vmatprep.subr.mxu0 0.0
        %1216 = vmatpush2.msra.mxu0 0.0
        %1217 = vmatprep.subr.mxu0 0.0
        %1218 = vmatpush2.msra.mxu0 0.0
        %1219 = vmatprep.subr.mxu0 0.0
        %1220 = vmatpush2.msra.mxu0 0.0
        %1221 = vmatprep.mubr.f32.mxu0 0.0
        %1222 = vmatmul.mubr.f32.gmra.mxu0 %v1152
        %v1223 = vpop.f32.mrf.mxu0
        %v1224 = vadd.f32 %v1149, %v1223
        %v1225 = vpop.f32.mrf.mxu0
        %1226 = vmatprep.mubr.f32.mxu0 0.0
        %1227 = vmatmul.mubr.f32.gmra.mxu0 %v1155
        %v1228 = vpop.f32.mrf.mxu0
        %v1229 = vadd.f32 %v1149, %v1228
        %v1230 = vpop.f32.mrf.mxu0
        %1231 = vdwg.mxu0
        %v1232 = vmax.f32 %v1224, 0.0
        %v1233 = vmax.f32 %v1229, 0.0
        %v1234 = vld [vmem:[#allocation8] sm:$0xff]
        %v1235 = vld [vmem:[#allocation8 + $0x8] sm:$0xff]
        %v1236 = vld [vmem:[#allocation8 + $0x10] sm:$0xff]
        %v1237 = vld [vmem:[#allocation8 + $0x18] sm:$0xff]
        %v1238 = vld [vmem:[%s6] sm:$0x1]
        %v1240 = vlaneseq
        %v1241 = vshrl.u32 %v1240, 7
        %v1242 = vsub.s32 0, %v1241
        %v1243 = vrot.slane %v1238, %v1242
        %v1246 = vsel %vm478, %v1232, 0
        %v1249 = vsel %vm478, %v1233, 0
        %1251 = vmatprep.subr.mxu0 0.0
        %1252 = vmatpush1.msra.mxu0 0.0
        %1253 = vmatprep.subr.mxu0 0.0
        %1254 = vmatpush1.msra.mxu0 0.0
        %1255 = vmatprep.subr.mxu0 0.0
        %1256 = vmatpush1.msra.mxu0 0.0
        %1257 = vmatprep.subr.mxu0 0.0
        %1258 = vmatpush1.msra.mxu0 0.0
        %1259 = vmatprep.subr.mxu0 0.0
        %1260 = vmatpush1.msra.mxu0 0.0
        %1261 = vmatprep.subr.mxu0 0.0
        %1262 = vmatpush1.msra.mxu0 0.0
        %1263 = vmatprep.subr.mxu0 0.0
        %1264 = vmatpush1.msra.mxu0 0.0
        %1265 = vmatprep.subr.mxu0 0.0
        %1266 = vmatpush1.msra.mxu0 0.0
        %1267 = vmatprep.subr.mxu0 0.0
        %1268 = vmatpush1.msra.mxu0 0.0
        %1269 = vmatprep.subr.mxu0 0.0
        %1270 = vmatpush1.msra.mxu0 0.0
        %1271 = vmatprep.subr.mxu0 0.0
        %1272 = vmatpush1.msra.mxu0 0.0
        %1273 = vmatprep.subr.mxu0 0.0
        %1274 = vmatpush1.msra.mxu0 0.0
        %1275 = vmatprep.subr.mxu0 0.0
        %1276 = vmatpush1.msra.mxu0 %v1237
        %1277 = vmatprep.subr.mxu0 0.0
        %1278 = vmatpush1.msra.mxu0 %v1236
        %1279 = vmatprep.subr.mxu0 0.0
        %1280 = vmatpush1.msra.mxu0 %v1235
        %1281 = vmatprep.subr.mxu0 0.0
        %1282 = vmatpush1.msra.mxu0 %v1234
        %1283 = vmatprep.subr.mxu0 0.0
        %1284 = vmatpush2.msra.mxu0 0.0
        %1285 = vmatprep.subr.mxu0 0.0
        %1286 = vmatpush2.msra.mxu0 0.0
        %1287 = vmatprep.subr.mxu0 0.0
        %1288 = vmatpush2.msra.mxu0 0.0
        %1289 = vmatprep.subr.mxu0 0.0
        %1290 = vmatpush2.msra.mxu0 0.0
        %1291 = vmatprep.subr.mxu0 0.0
        %1292 = vmatpush2.msra.mxu0 0.0
        %1293 = vmatprep.subr.mxu0 0.0
        %1294 = vmatpush2.msra.mxu0 0.0
        %1295 = vmatprep.subr.mxu0 0.0
        %1296 = vmatpush2.msra.mxu0 0.0
        %1297 = vmatprep.subr.mxu0 0.0
        %1298 = vmatpush2.msra.mxu0 0.0
        %1299 = vmatprep.subr.mxu0 0.0
        %1300 = vmatpush2.msra.mxu0 0.0
        %1301 = vmatprep.subr.mxu0 0.0
        %1302 = vmatpush2.msra.mxu0 0.0
        %1303 = vmatprep.subr.mxu0 0.0
        %1304 = vmatpush2.msra.mxu0 0.0
        %1305 = vmatprep.subr.mxu0 0.0
        %1306 = vmatpush2.msra.mxu0 0.0
        %1307 = vmatprep.subr.mxu0 0.0
        %1308 = vmatpush2.msra.mxu0 0.0
        %1309 = vmatprep.subr.mxu0 0.0
        %1310 = vmatpush2.msra.mxu0 0.0
        %1311 = vmatprep.subr.mxu0 0.0
        %1312 = vmatpush2.msra.mxu0 0.0
        %1313 = vmatprep.subr.mxu0 0.0
        %1314 = vmatpush2.msra.mxu0 0.0
        %1315 = vmatprep.mubr.f32.mxu0 0.0
        %1316 = vmatmul.mubr.f32.gmra.mxu0 %v1246
        %v1317 = vpop.f32.mrf.mxu0
        %v1318 = vadd.f32 %v1243, %v1317
        %v1319 = vpop.f32.mrf.mxu0
        %1320 = vmatprep.mubr.f32.mxu0 0.0
        %1321 = vmatmul.mubr.f32.gmra.mxu0 %v1249
        %v1322 = vpop.f32.mrf.mxu0
        %v1323 = vadd.f32 %v1243, %v1322
        %v1324 = vpop.f32.mrf.mxu0
        %1325 = vdwg.mxu0
        %1326 = vst.msk [vmem:[%s358] sm:$0xff] %vm478, %v1318
        %1327 = vst.msk [vmem:[%s358 + $0x8] sm:$0xff] %vm478, %v1323
        %s1328 = sand.u32 %s202, 1
        %s1329 = scalar_lea.sflag [#allocation4], %s1328
        %s1330 = sand.u32 %s202, 1
        %s1331 = smul.addr %s1330, 16
        %s1332 = scalar_lea.vmem [#allocation10], %s1331
        // Predicated region
        $region65: #{tpu_custom_call.1} parent=47 // pred_check
          %p1333 = pneg %p212
        $region66: #{tpu_custom_call.1} parent=47 // pred_check_branch
          %1335 = sbr.rel (%p1333) target = $region68
        $region67: #{tpu_custom_call.1} parent=47 // pred_region
          %s1336 = smul.u32 2, %s31
          %s1338 = ssub.s32 256, 256
          %1339 = vsyncadd %s1329, %s1338
          %s1340 = smul.addr %s30, 4
          %s1341 = sadd.s32 %s1336, %s1340
          %s1342 = smul.addr %s1341, 128
          %s1343 = scalar_lea.hbm %s7, %s1342
          %s1344 = sshll.u32 %s1332, 4
          %s1345 = int_to_ptr.vmem [resolvable:$true] %s1344
          %1350 = dma.vmem_to_hbm [thread:$0]  %s1345, 256, %s1343, %s1329, 128, 128, 8
        $region68: #{tpu_custom_call.1} parent=47 // pred_fallthru
          _
      $region48: #{tpu_custom_call.1} parent=5 // pred_fallthru
        _
      %p1351 = scmp.le.s32.totalorder 2, %s21
      // Predicated region
      $region69: #{tpu_custom_call.1} parent=5 // pred_check
        %p1352 = pneg %p1351
      $region70: #{tpu_custom_call.1} parent=5 // pred_check_branch
        %1354 = sbr.rel (%p1352) target = $region72
      $region71: #{tpu_custom_call.1} parent=5 // pred_region
        %s1355 = ssub.s32 %s21, 2
        // Predicated region
        $region73: #{tpu_custom_call.1} parent=71 // pred_check
          %p1356 = pneg %p218
        $region74: #{tpu_custom_call.1} parent=71 // pred_check_branch
          %1358 = sbr.rel (%p1356) target = $region76
        $region75: #{tpu_custom_call.1} parent=71 // pred_region
          %s1359 = sand.u32 %s203, 1
          %s1360 = scalar_lea.sflag [#allocation4], %s1359
          %s1361 = sand.u32 %s203, 1
          %s1362 = smul.addr %s1361, 16
          %s1363 = scalar_lea.vmem [#allocation10], %s1362
          %1364 = dma.done %s1360, 256
        $region76: #{tpu_custom_call.1} parent=71 // pred_fallthru
          _
      $region72: #{tpu_custom_call.1} parent=5 // pred_fallthru
        _
    $region6: #{tpu_custom_call.1} parent=1 // loop_footer
      %s25 = sadd.s32 1, %s21
    $region7: #{tpu_custom_call.1} parent=1 // loop_footer_branch
      %20 = sbr.rel target = $region3
    $region8: #{tpu_custom_call.1} parent=1 // loop_exit
      _
    %1365 = vsyncpa [#allocation3], 1
    %s1366 = scalar_lea.sflag [#allocation3], 1
    %1367 = vsyncpa %s1366, 1
    %1368 = vsyncpa [#allocation6], 1
    %1369 = vsyncpa [#allocation9], 1
    %1370 = vsyncpa [#allocation4], 1
    %s1371 = scalar_lea.sflag [#allocation4], 1
    %1372 = vsyncpa %s1371, 1

</llo_original>
